<compile_context>
chip_gen: v6e
topology: v6e:2x2x1
jax: 0.10.0
libtpu: 0.0.40
codegen_flags: <defaults>
</compile_context>

<pallas_src>
import functools

import jax
import jax.numpy as jnp
from jax import lax
from jax.experimental import pallas as pl
from jax.experimental.pallas import tpu as pltpu


_VMEM_LIMIT = 32 * 1024 * 1024


def _make_divisible(v, divisor, min_value=None):
    if min_value is None:
        min_value = divisor
    new_v = max(min_value, int(v + divisor / 2) // divisor * divisor)
    if new_v < 0.9 * v:
        new_v += divisor
    return new_v


def _round_up(v, m):
    return ((v + m - 1) // m) * m


def _pad_last(a, n):
    extra = n - a.shape[-1]
    if extra <= 0:
        return a
    return jnp.pad(a, [(0, 0)] * (a.ndim - 1) + [(0, extra)])


# ------------------------------ in-kernel helpers ------------------------------

def _apply_act(y, act):
    if act == "hswish":                       # x * relu6(x + 3) / 6
        return y * (jnp.clip(y + 3.0, 0.0, 6.0) * (1.0 / 6.0))
    if act == "relu":
        return jnp.maximum(y, 0.0)
    return y


def _zero_halo(pad_ref, pad):
    """Zero the halo border of the padded VMEM scratch (done every step: safe under
    megacore grid sharding, and far cheaper than an HBM-level jnp.pad)."""
    if pad <= 0:
        return
    hp, wp, c = pad_ref.shape
    pad_ref[0:pad, :, :] = jnp.zeros((pad, wp, c), jnp.float32)
    pad_ref[hp - pad:hp, :, :] = jnp.zeros((pad, wp, c), jnp.float32)
    pad_ref[:, 0:pad, :] = jnp.zeros((hp, pad, c), jnp.float32)
    pad_ref[:, wp - pad:wp, :] = jnp.zeros((hp, pad, c), jnp.float32)


def _dw_from_padded(pad_ref, w_dw_ref, hout, wout, hidden, k, stride):
    """Depthwise KxK conv (pre-bias, BN scale already folded into w_dw)."""
    acc = jnp.zeros((hout, wout, hidden), jnp.float32)
    if stride == 1:
        # Read shifted windows straight from the scratch ref (no k*k full-tile copies).
        for dh in range(k):
            for dw in range(k):
                acc = acc + (pad_ref[dh:dh + hout, dw:dw + wout, :]
                             * w_dw_ref[dh:dh + 1, dw:dw + 1, :])
    else:
        # strided path (stride == 2): one full load + k*k strided value slices
        xv = pad_ref[...]
        for dh in range(k):
            for dw in range(k):
                patch = lax.slice(
                    xv, (dh, dw, 0),
                    (dh + (hout - 1) * stride + 1, dw + (wout - 1) * stride + 1, hidden),
                    (stride, stride, 1))
                acc = acc + patch * w_dw_ref[dh:dh + 1, dw:dw + 1, :]
    return acc


# ------------------------------ kernel 1: expand + depthwise + GAP ------------------------------

def _head_expand_kernel(x_ref, w_exp_ref, exp_b_ref, w_dw_ref, dw_b_ref,
                        z_ref, gap_ref, epad_ref, *, k, stride, pad, act):
    h, w = x_ref.shape[1], x_ref.shape[2]
    hout, wout, hidden = z_ref.shape[1], z_ref.shape[2], z_ref.shape[3]

    _zero_halo(epad_ref, pad)

    # 1x1 expand (bf16 on the MXU, f32 accumulate) + folded-BN bias + activation,
    # written straight into the padded VMEM scratch (never hits HBM).
    xv = x_ref[0].reshape(h * w, x_ref.shape[3])
    e = jnp.dot(xv.astype(jnp.bfloat16), w_exp_ref[...],
                preferred_element_type=jnp.float32)
    e = _apply_act(e + exp_b_ref[...], act)
    epad_ref[pad:pad + h, pad:pad + w, :] = e.reshape(h, w, hidden)

    # depthwise KxK + folded-BN bias (activation comes after SE, in the tail kernel)
    z = _dw_from_padded(epad_ref, w_dw_ref, hout, wout, hidden, k, stride)
    z = z + dw_b_ref[...]

    gap_ref[...] = jnp.sum(z, axis=(0, 1), keepdims=True)   # SE global-pool sums (f32)
    z_ref[0] = z.astype(z_ref.dtype)                         # bf16 HBM intermediate


def _head_noexpand_kernel(x_ref, w_dw_ref, dw_b_ref,
                          z_ref, gap_ref, xpad_ref, *, k, stride, pad, act):
    h, w = x_ref.shape[1], x_ref.shape[2]
    hout, wout, hidden = z_ref.shape[1], z_ref.shape[2], z_ref.shape[3]

    _zero_halo(xpad_ref, pad)
    xpad_ref[pad:pad + h, pad:pad + w, :] = x_ref[0]

    z = _dw_from_padded(xpad_ref, w_dw_ref, hout, wout, hidden, k, stride)
    z = _apply_act(z + dw_b_ref[...], act)   # in this path the activation precedes SE

    gap_ref[...] = jnp.sum(z, axis=(0, 1), keepdims=True)
    z_ref[0] = z.astype(z_ref.dtype)


def _head(x, fp, *, expand, k, stride, act):
    b, h, w, cin = x.shape
    hidden = fp["w_dw"].shape[2]
    pad = (k - 1) // 2
    hp, wp = h + 2 * pad, w + 2 * pad
    hout = (hp - k) // stride + 1
    wout = (wp - k) // stride + 1

    out_shape = (jax.ShapeDtypeStruct((b, hout, wout, hidden), jnp.bfloat16),
                 jax.ShapeDtypeStruct((b, 1, hidden), jnp.float32))
    out_specs = (pl.BlockSpec((1, hout, wout, hidden), lambda i: (i, 0, 0, 0)),
                 pl.BlockSpec((1, 1, hidden), lambda i: (i, 0, 0)))
    x_spec = pl.BlockSpec((1, h, w, cin), lambda i: (i, 0, 0, 0))
    dw_spec = pl.BlockSpec((k, k, hidden), lambda i: (0, 0, 0))
    dwb_spec = pl.BlockSpec((1, 1, hidden), lambda i: (0, 0, 0))
    cp = pltpu.CompilerParams(dimension_semantics=("parallel",),
                              vmem_limit_bytes=_VMEM_LIMIT)
    scratch = [pltpu.VMEM((hp, wp, hidden), jnp.float32)]

    if expand:
        kern = functools.partial(_head_expand_kernel, k=k, stride=stride, pad=pad, act=act)
        in_specs = [x_spec,
                    pl.BlockSpec((cin, hidden), lambda i: (0, 0)),
                    pl.BlockSpec((1, hidden), lambda i: (0, 0)),
                    dw_spec, dwb_spec]
        args = (x, fp["w_exp"], fp["exp_b"], fp["w_dw"], fp["dw_b"])
    else:
        kern = functools.partial(_head_noexpand_kernel, k=k, stride=stride, pad=pad, act=act)
        in_specs = [x_spec, dw_spec, dwb_spec]
        args = (x, fp["w_dw"], fp["dw_b"])

    z, gap = pl.pallas_call(
        kern, out_shape=out_shape, grid=(b,),
        in_specs=in_specs, out_specs=out_specs,
        scratch_shapes=scratch, compiler_params=cp,
    )(*args)
    return z, gap


# ------------------------------ kernel 2: gate + act + projection (+ residual) ------------------------------

def _tail_kernel(z_ref, gate_ref, w_proj_ref, b_ref, *rest, post_act, residual):
    if residual:
        x_ref, w_ds_ref, o_ref = rest
    else:
        (o_ref,) = rest
    th, wout, hidden = z_ref.shape[1], z_ref.shape[2], z_ref.shape[3]
    oupp = o_ref.shape[3]

    zv = z_ref[0].astype(jnp.float32) * gate_ref[...]          # SE gate (ones if no SE)
    zv = _apply_act(zv, post_act)
    y = jnp.dot(zv.reshape(th * wout, hidden).astype(jnp.bfloat16), w_proj_ref[...],
                preferred_element_type=jnp.float32)
    if residual:
        # downsample 1x1 conv fused onto the same accumulator (no extra HBM pass)
        xv = x_ref[0].reshape(th * wout, x_ref.shape[3])
        y = y + jnp.dot(xv.astype(jnp.bfloat16), w_ds_ref[...],
                        preferred_element_type=jnp.float32)
    y = y + b_ref[...]                                          # proj (+ ds) folded bias
    o_ref[0] = y.reshape(th, wout, oupp)                        # lane-dense (oupp % 128 == 0)


def _pick_row_tile(hout, wout, hidden, oupp, cin_res, budget=8 * 1024 * 1024):
    """Largest divisor of hout whose double-buffered block footprint fits the budget."""
    for th in range(hout, 0, -1):
        if hout % th:
            continue
        per_block = th * wout * (2 * hidden + 4 * oupp + 4 * cin_res)
        if 2 * per_block <= budget:
            return th
    return 1


def _tail(z, gate, x_res, fp, *, post_act):
    b, hout, wout, hidden = z.shape
    oupp = fp["w_proj"].shape[1]
    cin_res = x_res.shape[3] if x_res is not None else 0
    th = _pick_row_tile(hout, wout, hidden, oupp, cin_res)
    grid = (b, hout // th)

    z_spec = pl.BlockSpec((1, th, wout, hidden), lambda i, j: (i, j, 0, 0))
    g_spec = pl.BlockSpec((1, 1, hidden), lambda i, j: (i, 0, 0))
    wp_spec = pl.BlockSpec((hidden, oupp), lambda i, j: (0, 0))
    b_spec = pl.BlockSpec((1, oupp), lambda i, j: (0, 0))
    o_spec = pl.BlockSpec((1, th, wout, oupp), lambda i, j: (i, j, 0, 0))
    cp = pltpu.CompilerParams(dimension_semantics=("parallel", "parallel"),
                              vmem_limit_bytes=_VMEM_LIMIT)
    out_shape = jax.ShapeDtypeStruct((b, hout, wout, oupp), jnp.float32)

    if x_res is not None:
        x_spec = pl.BlockSpec((1, th, wout, cin_res), lambda i, j: (i, j, 0, 0))
        ds_spec = pl.BlockSpec((cin_res, oupp), lambda i, j: (0, 0))
        kern = functools.partial(_tail_kernel, post_act=post_act, residual=True)
        return pl.pallas_call(
            kern, out_shape=out_shape, grid=grid,
            in_specs=[z_spec, g_spec, wp_spec, b_spec, x_spec, ds_spec],
            out_specs=o_spec, compiler_params=cp,
        )(z, gate, fp["w_proj"], fp["b_proj"], x_res, fp["w_ds"])

    kern = functools.partial(_tail_kernel, post_act=post_act, residual=False)
    return pl.pallas_call(
        kern, out_shape=out_shape, grid=grid,
        in_specs=[z_spec, g_spec, wp_spec, b_spec],
        out_specs=o_spec, compiler_params=cp,
    )(z, gate, fp["w_proj"], fp["b_proj"])


# ------------------------------ InvertedResidual forward ------------------------------

def inverted_residual(x, fp, *, inp, hidden_dim, oup, kernel_size, stride, use_se, use_hs):
    """x: (B, H, W, inp) float32 NHWC.  Returns (B, Hout, Wout, oup) float32."""
    assert kernel_size % 2 == 1, "symmetric 'same' padding assumes odd kernel_size"
    b = x.shape[0]
    act = "hswish" if use_hs else "relu"
    expand = inp != hidden_dim

    # kernel 1: [expand + BN + act] -> depthwise + BN [-> act if no expand], + GAP sums
    z, gap = _head(x, fp, expand=expand, k=kernel_size, stride=stride, act=act)
    hout, wout = z.shape[1], z.shape[2]

    # SE gate: two tiny (M=1) FCs in plain JAX, off the hot path.
    if use_se:
        pooled = gap[:, 0, :] * (1.0 / (hout * wout))
        g = jnp.maximum(pooled @ fp["se_w1"] + fp["se_b1"], 0.0)
        g = jnp.clip(g @ fp["se_w2"] + fp["se_b2"] + 3.0, 0.0, 6.0) * (1.0 / 6.0)
        gate = g[:, None, :]
    else:
        gate = jnp.ones((b, 1, hidden_dim), jnp.float32)

    # kernel 2: gate * (post-)act * proj(+BN)  [+ fused downsample residual]
    post_act = act if expand else "none"
    x_res = x if stride == 1 else None        # module adds downsample(x) iff stride == 1
    out = _tail(z, gate, x_res, fp, post_act=post_act)
    return out[..., :oup]                     # drop lane-padding of the output channels


# ------------------------------ deterministic parameters ------------------------------

def _bn_fold(key, c, eps=1e-5):
    k1, k2, k3, k4 = jax.random.split(key, 4)
    gamma = 1.0 + 0.1 * jax.random.normal(k1, (c,), jnp.float32)
    beta = 0.1 * jax.random.normal(k2, (c,), jnp.float32)
    mean = 0.1 * jax.random.normal(k3, (c,), jnp.float32)
    var = jax.random.uniform(k4, (c,), jnp.float32, 0.5, 1.5)
    scale = gamma / jnp.sqrt(var + eps)
    bias = beta - mean * scale
    return scale.reshape(1, c), bias.reshape(1, c)


def make_params(key, inp, hidden_dim, oup, kernel_size, use_se):
    ks = jax.random.split(key, 12)
    p = {}
    if inp != hidden_dim:
        p["w_exp"] = 0.2 * jax.random.normal(ks[0], (inp, hidden_dim), jnp.float32)
        p["exp_scale"], p["exp_bias"] = _bn_fold(ks[1], hidden_dim)
    p["w_dw"] = 0.2 * jax.random.normal(ks[2], (kernel_size, kernel_size, hidden_dim), jnp.float32)
    p["dw_scale"], p["dw_bias"] = _bn_fold(ks[3], hidden_dim)
    if use_se:
        cr = _make_divisible(hidden_dim // 4, 8)
        p["se_w1"] = 0.2 * jax.random.normal(ks[4], (hidden_dim, cr), jnp.float32)
        p["se_b1"] = 0.1 * jax.random.normal(ks[5], (1, cr), jnp.float32)
        p["se_w2"] = 0.2 * jax.random.normal(ks[6], (cr, hidden_dim), jnp.float32)
        p["se_b2"] = 0.1 * jax.random.normal(ks[7], (1, hidden_dim), jnp.float32)
    p["w_proj"] = 0.2 * jax.random.normal(ks[8], (hidden_dim, oup), jnp.float32)
    p["proj_scale"], p["proj_bias"] = _bn_fold(ks[9], oup)
    p["w_ds"] = 0.2 * jax.random.normal(ks[10], (inp, oup), jnp.float32)
    p["ds_scale"], p["ds_bias"] = _bn_fold(ks[11], oup)
    return p


def fold_params(p, *, inp, hidden_dim, oup, stride, use_se):
    """Fold BN scales into conv weights, cast matmul weights to bf16, and pad the
    projection/downsample output channels up to a multiple of 128 (lane-dense stores)."""
    oupp = _round_up(oup, 128)
    fp = {}
    if inp != hidden_dim:
        fp["w_exp"] = (p["w_exp"] * p["exp_scale"]).astype(jnp.bfloat16)
        fp["exp_b"] = p["exp_bias"]
    fp["w_dw"] = p["w_dw"] * p["dw_scale"].reshape(1, 1, hidden_dim)
    fp["dw_b"] = p["dw_bias"].reshape(1, 1, hidden_dim)
    w_proj = p["w_proj"] * p["proj_scale"]
    b_proj = p["proj_bias"]
    if stride == 1:
        fp["w_ds"] = _pad_last(p["w_ds"] * p["ds_scale"], oupp).astype(jnp.bfloat16)
        b_proj = b_proj + p["ds_bias"]
    fp["w_proj"] = _pad_last(w_proj, oupp).astype(jnp.bfloat16)
    fp["b_proj"] = _pad_last(b_proj, oupp)
    if use_se:
        for name in ("se_w1", "se_b1", "se_w2", "se_b2"):
            fp[name] = p[name]
    return fp


# ------------------------------ pure-JAX reference ------------------------------

def reference(x, fp, *, inp, hidden_dim, oup, kernel_size, stride, use_se, use_hs):
    """Plain-JAX reference mirroring the kernels' precision policy: bf16 operands at
    the MXU boundary, bf16 HBM storage of the hidden activation, f32 elementwise."""
    act = "hswish" if use_hs else "relu"
    pad = (kernel_size - 1) // 2

    def pw(v, wmat):
        return jnp.einsum("bhwi,io->bhwo", v.astype(jnp.bfloat16), wmat,
                          preferred_element_type=jnp.float32)

    def dw(v):
        return lax.conv_general_dilated(
            v, fp["w_dw"].reshape(kernel_size, kernel_size, 1, hidden_dim),
            window_strides=(stride, stride), padding=[(pad, pad), (pad, pad)],
            dimension_numbers=("NHWC", "HWIO", "NHWC"),
            feature_group_count=hidden_dim, precision=lax.Precision.HIGHEST)

    if inp != hidden_dim:
        e = _apply_act(pw(x, fp["w_exp"]) + fp["exp_b"], act)
        z = dw(e) + fp["dw_b"]
        post = act
    else:
        z = _apply_act(dw(x) + fp["dw_b"], act)
        post = "none"

    if use_se:
        pooled = jnp.mean(z, axis=(1, 2))
        g = jnp.maximum(pooled @ fp["se_w1"] + fp["se_b1"], 0.0)
        g = jnp.clip(g @ fp["se_w2"] + fp["se_b2"] + 3.0, 0.0, 6.0) / 6.0
        gate = g[:, None, None, :]
    else:
        gate = 1.0

    z = z.astype(jnp.bfloat16).astype(jnp.float32)     # mirror the bf16 HBM round trip
    y = _apply_act(z * gate, post)
    out = pw(y, fp["w_proj"]) + fp["b_proj"]
    if stride == 1:
        out = out + pw(x, fp["w_ds"])
    return out[..., :oup]


if __name__ == "__main__":
    key = jax.random.PRNGKey(0)
    configs = [
        # name,                 B, INP, H,  W,  HID, OUP, K, STRIDE, USE_SE, USE_HS
        ("expand+se+hswish s1", 2, 8,  16, 16, 16,  8,   3, 1,      True,  True),
        ("no-expand relu   s1", 2, 16, 16, 16, 16,  16,  3, 1,      False, False),
    ]
    for name, B, INP, H, W, HID, OUP, K, STRIDE, USE_SE, USE_HS in configs:
        key, kx, kp = jax.random.split(key, 3)
        x_nchw = jax.random.normal(kx, (B, INP, H, W), jnp.float32)   # PyTorch-style NCHW
        raw = make_params(kp, INP, HID, OUP, K, USE_SE)
        fp = fold_params(raw, inp=INP, hidden_dim=HID, oup=OUP, stride=STRIDE, use_se=USE_SE)

        x_nhwc = jnp.transpose(x_nchw, (0, 2, 3, 1))
        out_nhwc = inverted_residual(x_nhwc, fp, inp=INP, hidden_dim=HID, oup=OUP,
                                     kernel_size=K, stride=STRIDE,
                                     use_se=USE_SE, use_hs=USE_HS)
        out_nchw = jnp.transpose(out_nhwc, (0, 3, 1, 2))
        jax.block_until_ready(out_nchw)

        ref = reference(x_nhwc, fp, inp=INP, hidden_dim=HID, oup=OUP,
                        kernel_size=K, stride=STRIDE, use_se=USE_SE, use_hs=USE_HS)
        assert out_nchw.shape == (B, OUP, H, W), (name, out_nchw.shape)
        max_err = float(jnp.max(jnp.abs(out_nhwc - ref)))
        assert jnp.allclose(out_nhwc, ref, rtol=5e-3, atol=5e-3), (name, max_err)
    print("KERNEL_OK")
</pallas_src>

<mosaic_0001>
module attributes {stable_mosaic.version = 11 : i64} {
  func.func @_head_expand_kernel(%arg0: i32, %arg1: memref<1x16x16x8xf32, #tpu.memory_space<vmem>>, %arg2: memref<8x16xbf16, #tpu.memory_space<vmem>>, %arg3: memref<1x16xf32, #tpu.memory_space<vmem>>, %arg4: memref<3x3x16xf32, #tpu.memory_space<vmem>>, %arg5: memref<1x1x16xf32, #tpu.memory_space<vmem>>, %arg6: memref<1x16x16x16xbf16, #tpu.memory_space<vmem>>, %arg7: memref<1x1x16xf32, #tpu.memory_space<vmem>>, %arg8: memref<18x18x16xf32, #tpu.memory_space<vmem>>) attributes {dimension_semantics = [#tpu.dimension_semantics<parallel>], iteration_bounds = array<i64: 2>, scalar_prefetch = 0 : i64, scratch_operands = 1 : i64, tpu.core_type = #tpu.core_type<tc>, window_params = [{transform_indices = @transform_0, window_bounds = array<i64: 1, 16, 16, 8>}, {pipeline_mode = #tpu.pipeline_mode<synchronous>, transform_indices = @transform_1, window_bounds = array<i64: 8, 16>}, {pipeline_mode = #tpu.pipeline_mode<synchronous>, transform_indices = @transform_2, window_bounds = array<i64: 1, 16>}, {pipeline_mode = #tpu.pipeline_mode<synchronous>, transform_indices = @transform_3, window_bounds = array<i64: 3, 3, 16>}, {pipeline_mode = #tpu.pipeline_mode<synchronous>, transform_indices = @transform_4, window_bounds = array<i64: 1, 1, 16>}, {transform_indices = @transform_5, window_bounds = array<i64: 1, 16, 16, 16>}, {transform_indices = @transform_6, window_bounds = array<i64: 1, 1, 16>}]} {
    %cst = arith.constant 0.000000e+00 : f32
    %0 = vector.broadcast %cst : f32 to vector<1x18x16xf32>
    %c0 = arith.constant 0 : index
    %c0_0 = arith.constant 0 : index
    %c0_1 = arith.constant 0 : index
    %1 = vector.load %arg8[%c0, %c0_0, %c0_1] : memref<18x18x16xf32, #tpu.memory_space<vmem>>, vector<1x18x16xf32>
    tpu.vector_store %arg8[%c0, %c0_0, %c0_1], %0 {strides = array<i32>} : memref<18x18x16xf32, #tpu.memory_space<vmem>>, vector<1x18x16xf32>,
    %cst_2 = arith.constant 0.000000e+00 : f32
    %2 = vector.broadcast %cst_2 : f32 to vector<1x18x16xf32>
    %c17 = arith.constant 17 : index
    %c0_3 = arith.constant 0 : index
    %c0_4 = arith.constant 0 : index
    %3 = vector.load %arg8[%c17, %c0_3, %c0_4] : memref<18x18x16xf32, #tpu.memory_space<vmem>>, vector<1x18x16xf32>
    tpu.vector_store %arg8[%c17, %c0_3, %c0_4], %2 {strides = array<i32>} : memref<18x18x16xf32, #tpu.memory_space<vmem>>, vector<1x18x16xf32>,
    %cst_5 = arith.constant 0.000000e+00 : f32
    %4 = vector.broadcast %cst_5 : f32 to vector<18x1x16xf32>
    %c0_6 = arith.constant 0 : index
    %c0_7 = arith.constant 0 : index
    %c0_8 = arith.constant 0 : index
    %5 = vector.load %arg8[%c0_6, %c0_7, %c0_8] : memref<18x18x16xf32, #tpu.memory_space<vmem>>, vector<18x1x16xf32>
    tpu.vector_store %arg8[%c0_6, %c0_7, %c0_8], %4 {strides = array<i32>} : memref<18x18x16xf32, #tpu.memory_space<vmem>>, vector<18x1x16xf32>,
    %cst_9 = arith.constant 0.000000e+00 : f32
    %6 = vector.broadcast %cst_9 : f32 to vector<18x1x16xf32>
    %c0_10 = arith.constant 0 : index
    %c17_11 = arith.constant 17 : index
    %c0_12 = arith.constant 0 : index
    %7 = vector.load %arg8[%c0_10, %c17_11, %c0_12] : memref<18x18x16xf32, #tpu.memory_space<vmem>>, vector<18x1x16xf32>
    tpu.vector_store %arg8[%c0_10, %c17_11, %c0_12], %6 {strides = array<i32>} : memref<18x18x16xf32, #tpu.memory_space<vmem>>, vector<18x1x16xf32>,
    %c0_13 = arith.constant 0 : index
    %c0_14 = arith.constant 0 : index
    %c0_15 = arith.constant 0 : index
    %c0_16 = arith.constant 0 : index
    %8 = vector.load %arg1[%c0_13, %c0_14, %c0_15, %c0_16] : memref<1x16x16x8xf32, #tpu.memory_space<vmem>>, vector<1x16x16x8xf32>
    %9 = vector.shape_cast %8 : vector<1x16x16x8xf32> to vector<16x16x8xf32>
    %10 = vector.shape_cast %9 : vector<16x16x8xf32> to vector<256x8xf32>
    %11 = arith.truncf %10 : vector<256x8xf32> to vector<256x8xbf16>
    %c0_17 = arith.constant 0 : index
    %c0_18 = arith.constant 0 : index
    %12 = vector.load %arg2[%c0_17, %c0_18] : memref<8x16xbf16, #tpu.memory_space<vmem>>, vector<8x16xbf16>
    %cst_19 = arith.constant dense<0.000000e+00> : vector<256x16xf32>
    %13 = tpu.matmul %11, %12, %cst_19 {dimension_numbers = #tpu.dot_dimension_numbers<[1], [0], [0], [1], [0, 0, 1, 1], [], []>} : vector<256x8xbf16>, vector<8x16xbf16>, vector<256x16xf32> -> vector<256x16xf32>
    %c0_20 = arith.constant 0 : index
    %c0_21 = arith.constant 0 : index
    %14 = vector.load %arg3[%c0_20, %c0_21] : memref<1x16xf32, #tpu.memory_space<vmem>>, vector<1x16xf32>
    %15 = vector.broadcast %14 : vector<1x16xf32> to vector<256x16xf32>
    %16 = arith.addf %13, %15 : vector<256x16xf32>
    %cst_22 = arith.constant 3.000000e+00 : f32
    %17 = vector.broadcast %cst_22 : f32 to vector<256x16xf32>
    %18 = arith.addf %16, %17 : vector<256x16xf32>
    %cst_23 = arith.constant 0.000000e+00 : f32
    %cst_24 = arith.constant 6.000000e+00 : f32
    %19 = vector.broadcast %cst_23 : f32 to vector<256x16xf32>
    %20 = arith.maximumf %19, %18 : vector<256x16xf32>
    %21 = vector.broadcast %cst_24 : f32 to vector<256x16xf32>
    %22 = arith.minimumf %21, %20 : vector<256x16xf32>
    %cst_25 = arith.constant 0.166666672 : f32
    %23 = vector.broadcast %cst_25 : f32 to vector<256x16xf32>
    %24 = arith.mulf %22, %23 : vector<256x16xf32>
    %25 = arith.mulf %16, %24 : vector<256x16xf32>
    %26 = vector.shape_cast %25 : vector<256x16xf32> to vector<16x16x16xf32>
    %c1 = arith.constant 1 : index
    %c1_26 = arith.constant 1 : index
    %c0_27 = arith.constant 0 : index
    %27 = vector.load %arg8[%c1, %c1_26, %c0_27] : memref<18x18x16xf32, #tpu.memory_space<vmem>>, vector<16x16x16xf32>
    tpu.vector_store %arg8[%c1, %c1_26, %c0_27], %26 {strides = array<i32>} : memref<18x18x16xf32, #tpu.memory_space<vmem>>, vector<16x16x16xf32>,
    %cst_28 = arith.constant 0.000000e+00 : f32
    %28 = vector.broadcast %cst_28 : f32 to vector<16x16x16xf32>
    %c0_29 = arith.constant 0 : index
    %c0_30 = arith.constant 0 : index
    %c0_31 = arith.constant 0 : index
    %29 = vector.load %arg8[%c0_29, %c0_30, %c0_31] : memref<18x18x16xf32, #tpu.memory_space<vmem>>, vector<16x16x16xf32>
    %c0_32 = arith.constant 0 : index
    %c0_33 = arith.constant 0 : index
    %c0_34 = arith.constant 0 : index
    %30 = vector.load %arg4[%c0_32, %c0_33, %c0_34] : memref<3x3x16xf32, #tpu.memory_space<vmem>>, vector<1x1x16xf32>
    %31 = vector.broadcast %30 : vector<1x1x16xf32> to vector<16x16x16xf32>
    %32 = arith.mulf %29, %31 : vector<16x16x16xf32>
    %33 = arith.addf %28, %32 : vector<16x16x16xf32>
    %c0_35 = arith.constant 0 : index
    %c1_36 = arith.constant 1 : index
    %c0_37 = arith.constant 0 : index
    %34 = vector.load %arg8[%c0_35, %c1_36, %c0_37] : memref<18x18x16xf32, #tpu.memory_space<vmem>>, vector<16x16x16xf32>
    %c0_38 = arith.constant 0 : index
    %c1_39 = arith.constant 1 : index
    %c0_40 = arith.constant 0 : index
    %35 = vector.load %arg4[%c0_38, %c1_39, %c0_40] : memref<3x3x16xf32, #tpu.memory_space<vmem>>, vector<1x1x16xf32>
    %36 = vector.broadcast %35 : vector<1x1x16xf32> to vector<16x16x16xf32>
    %37 = arith.mulf %34, %36 : vector<16x16x16xf32>
    %38 = arith.addf %33, %37 : vector<16x16x16xf32>
    %c0_41 = arith.constant 0 : index
    %c2 = arith.constant 2 : index
    %c0_42 = arith.constant 0 : index
    %39 = vector.load %arg8[%c0_41, %c2, %c0_42] : memref<18x18x16xf32, #tpu.memory_space<vmem>>, vector<16x16x16xf32>
    %c0_43 = arith.constant 0 : index
    %c2_44 = arith.constant 2 : index
    %c0_45 = arith.constant 0 : index
    %40 = vector.load %arg4[%c0_43, %c2_44, %c0_45] : memref<3x3x16xf32, #tpu.memory_space<vmem>>, vector<1x1x16xf32>
    %41 = vector.broadcast %40 : vector<1x1x16xf32> to vector<16x16x16xf32>
    %42 = arith.mulf %39, %41 : vector<16x16x16xf32>
    %43 = arith.addf %38, %42 : vector<16x16x16xf32>
    %c1_46 = arith.constant 1 : index
    %c0_47 = arith.constant 0 : index
    %c0_48 = arith.constant 0 : index
    %44 = vector.load %arg8[%c1_46, %c0_47, %c0_48] : memref<18x18x16xf32, #tpu.memory_space<vmem>>, vector<16x16x16xf32>
    %c1_49 = arith.constant 1 : index
    %c0_50 = arith.constant 0 : index
    %c0_51 = arith.constant 0 : index
    %45 = vector.load %arg4[%c1_49, %c0_50, %c0_51] : memref<3x3x16xf32, #tpu.memory_space<vmem>>, vector<1x1x16xf32>
    %46 = vector.broadcast %45 : vector<1x1x16xf32> to vector<16x16x16xf32>
    %47 = arith.mulf %44, %46 : vector<16x16x16xf32>
    %48 = arith.addf %43, %47 : vector<16x16x16xf32>
    %c1_52 = arith.constant 1 : index
    %c1_53 = arith.constant 1 : index
    %c0_54 = arith.constant 0 : index
    %49 = vector.load %arg8[%c1_52, %c1_53, %c0_54] : memref<18x18x16xf32, #tpu.memory_space<vmem>>, vector<16x16x16xf32>
    %c1_55 = arith.constant 1 : index
    %c1_56 = arith.constant 1 : index
    %c0_57 = arith.constant 0 : index
    %50 = vector.load %arg4[%c1_55, %c1_56, %c0_57] : memref<3x3x16xf32, #tpu.memory_space<vmem>>, vector<1x1x16xf32>
    %51 = vector.broadcast %50 : vector<1x1x16xf32> to vector<16x16x16xf32>
    %52 = arith.mulf %49, %51 : vector<16x16x16xf32>
    %53 = arith.addf %48, %52 : vector<16x16x16xf32>
    %c1_58 = arith.constant 1 : index
    %c2_59 = arith.constant 2 : index
    %c0_60 = arith.constant 0 : index
    %54 = vector.load %arg8[%c1_58, %c2_59, %c0_60] : memref<18x18x16xf32, #tpu.memory_space<vmem>>, vector<16x16x16xf32>
    %c1_61 = arith.constant 1 : index
    %c2_62 = arith.constant 2 : index
    %c0_63 = arith.constant 0 : index
    %55 = vector.load %arg4[%c1_61, %c2_62, %c0_63] : memref<3x3x16xf32, #tpu.memory_space<vmem>>, vector<1x1x16xf32>
    %56 = vector.broadcast %55 : vector<1x1x16xf32> to vector<16x16x16xf32>
    %57 = arith.mulf %54, %56 : vector<16x16x16xf32>
    %58 = arith.addf %53, %57 : vector<16x16x16xf32>
    %c2_64 = arith.constant 2 : index
    %c0_65 = arith.constant 0 : index
    %c0_66 = arith.constant 0 : index
    %59 = vector.load %arg8[%c2_64, %c0_65, %c0_66] : memref<18x18x16xf32, #tpu.memory_space<vmem>>, vector<16x16x16xf32>
    %c2_67 = arith.constant 2 : index
    %c0_68 = arith.constant 0 : index
    %c0_69 = arith.constant 0 : index
    %60 = vector.load %arg4[%c2_67, %c0_68, %c0_69] : memref<3x3x16xf32, #tpu.memory_space<vmem>>, vector<1x1x16xf32>
    %61 = vector.broadcast %60 : vector<1x1x16xf32> to vector<16x16x16xf32>
    %62 = arith.mulf %59, %61 : vector<16x16x16xf32>
    %63 = arith.addf %58, %62 : vector<16x16x16xf32>
    %c2_70 = arith.constant 2 : index
    %c1_71 = arith.constant 1 : index
    %c0_72 = arith.constant 0 : index
    %64 = vector.load %arg8[%c2_70, %c1_71, %c0_72] : memref<18x18x16xf32, #tpu.memory_space<vmem>>, vector<16x16x16xf32>
    %c2_73 = arith.constant 2 : index
    %c1_74 = arith.constant 1 : index
    %c0_75 = arith.constant 0 : index
    %65 = vector.load %arg4[%c2_73, %c1_74, %c0_75] : memref<3x3x16xf32, #tpu.memory_space<vmem>>, vector<1x1x16xf32>
    %66 = vector.broadcast %65 : vector<1x1x16xf32> to vector<16x16x16xf32>
    %67 = arith.mulf %64, %66 : vector<16x16x16xf32>
    %68 = arith.addf %63, %67 : vector<16x16x16xf32>
    %c2_76 = arith.constant 2 : index
    %c2_77 = arith.constant 2 : index
    %c0_78 = arith.constant 0 : index
    %69 = vector.load %arg8[%c2_76, %c2_77, %c0_78] : memref<18x18x16xf32, #tpu.memory_space<vmem>>, vector<16x16x16xf32>
    %c2_79 = arith.constant 2 : index
    %c2_80 = arith.constant 2 : index
    %c0_81 = arith.constant 0 : index
    %70 = vector.load %arg4[%c2_79, %c2_80, %c0_81] : memref<3x3x16xf32, #tpu.memory_space<vmem>>, vector<1x1x16xf32>
    %71 = vector.broadcast %70 : vector<1x1x16xf32> to vector<16x16x16xf32>
    %72 = arith.mulf %69, %71 : vector<16x16x16xf32>
    %73 = arith.addf %68, %72 : vector<16x16x16xf32>
    %c0_82 = arith.constant 0 : index
    %c0_83 = arith.constant 0 : index
    %c0_84 = arith.constant 0 : index
    %74 = vector.load %arg5[%c0_82, %c0_83, %c0_84] : memref<1x1x16xf32, #tpu.memory_space<vmem>>, vector<1x1x16xf32>
    %75 = vector.broadcast %74 : vector<1x1x16xf32> to vector<16x16x16xf32>
    %76 = arith.addf %73, %75 : vector<16x16x16xf32>
    %cst_85 = arith.constant dense<0.000000e+00> : vector<16xf32>
    %77 = vector.multi_reduction <add>, %76, %cst_85 [0, 1] : vector<16x16x16xf32> to vector<16xf32>
    %78 = vector.shape_cast %77 : vector<16xf32> to vector<1x1x16xf32>
    %c0_86 = arith.constant 0 : index
    %c0_87 = arith.constant 0 : index
    %c0_88 = arith.constant 0 : index
    %79 = vector.load %arg7[%c0_86, %c0_87, %c0_88] : memref<1x1x16xf32, #tpu.memory_space<vmem>>, vector<1x1x16xf32>
    tpu.vector_store %arg7[%c0_86, %c0_87, %c0_88], %78 {strides = array<i32>} : memref<1x1x16xf32, #tpu.memory_space<vmem>>, vector<1x1x16xf32>,
    %80 = arith.truncf %76 : vector<16x16x16xf32> to vector<16x16x16xbf16>
    %c0_89 = arith.constant 0 : index
    %c0_90 = arith.constant 0 : index
    %c0_91 = arith.constant 0 : index
    %c0_92 = arith.constant 0 : index
    %81 = vector.load %arg6[%c0_89, %c0_90, %c0_91, %c0_92] : memref<1x16x16x16xbf16, #tpu.memory_space<vmem>>, vector<1x16x16x16xbf16>
    %82 = vector.shape_cast %81 : vector<1x16x16x16xbf16> to vector<16x16x16xbf16>
    %83 = vector.shape_cast %80 : vector<16x16x16xbf16> to vector<1x16x16x16xbf16>
    tpu.vector_store %arg6[%c0_89, %c0_90, %c0_91, %c0_92], %83 {strides = array<i32>} : memref<1x16x16x16xbf16, #tpu.memory_space<vmem>>, vector<1x16x16x16xbf16>,
    return
  }
  func.func @transform_0(%arg0: i32) -> (i32, i32, i32, i32) {
    %c0_i32 = arith.constant 0 : i32
    %c0_i32_0 = arith.constant 0 : i32
    %c0_i32_1 = arith.constant 0 : i32
    %c0_i32_2 = arith.constant 0 : i32
    return %arg0, %c0_i32, %c0_i32_0, %c0_i32_1 : i32, i32, i32, i32
  }
  func.func @transform_1(%arg0: i32) -> (i32, i32) {
    %c0_i32 = arith.constant 0 : i32
    %c0_i32_0 = arith.constant 0 : i32
    %c0_i32_1 = arith.constant 0 : i32
    return %c0_i32, %c0_i32_0 : i32, i32
  }
  func.func @transform_2(%arg0: i32) -> (i32, i32) {
    %c0_i32 = arith.constant 0 : i32
    %c0_i32_0 = arith.constant 0 : i32
    %c0_i32_1 = arith.constant 0 : i32
    return %c0_i32, %c0_i32_0 : i32, i32
  }
  func.func @transform_3(%arg0: i32) -> (i32, i32, i32) {
    %c0_i32 = arith.constant 0 : i32
    %c0_i32_0 = arith.constant 0 : i32
    %c0_i32_1 = arith.constant 0 : i32
    %c0_i32_2 = arith.constant 0 : i32
    return %c0_i32, %c0_i32_0, %c0_i32_1 : i32, i32, i32
  }
  func.func @transform_4(%arg0: i32) -> (i32, i32, i32) {
    %c0_i32 = arith.constant 0 : i32
    %c0_i32_0 = arith.constant 0 : i32
    %c0_i32_1 = arith.constant 0 : i32
    %c0_i32_2 = arith.constant 0 : i32
    return %c0_i32, %c0_i32_0, %c0_i32_1 : i32, i32, i32
  }
  func.func @transform_5(%arg0: i32) -> (i32, i32, i32, i32) {
    %c0_i32 = arith.constant 0 : i32
    %c0_i32_0 = arith.constant 0 : i32
    %c0_i32_1 = arith.constant 0 : i32
    %c0_i32_2 = arith.constant 0 : i32
    return %arg0, %c0_i32, %c0_i32_0, %c0_i32_1 : i32, i32, i32, i32
  }
  func.func @transform_6(%arg0: i32) -> (i32, i32, i32) {
    %c0_i32 = arith.constant 0 : i32
    %c0_i32_0 = arith.constant 0 : i32
    %c0_i32_1 = arith.constant 0 : i32
    return %arg0, %c0_i32, %c0_i32_0 : i32, i32, i32
  }
}

</mosaic_0001>

<llo_original>
// kernel: tpu_custom_call.1
$region0: #{tpu_custom_call.1}
  #allocation0 [shape = 'u32[]', space=smem, size = 0x4, offset = 0x4, fixed_abs, tag = 'smem constant byte address 0x4 - core index']
  #allocation1 [shape = 'u32[144,128]{1,0:T(1,128)}', space=vmem, size = 0x12000, scoped, tag = 'internal scratch']
  #allocation2 [shape = 'f32[18,18,16]{2,1,0:T(8,128)}', space=vmem, size = 0x36000, scoped, tag = 'scratch operand']
  %s0 = inlined_call_operand.vmem [shape: f32[2,16,16,8], index: 0, kind: input, shape index: {}]
  %s1 = inlined_call_operand.vmem [shape: bf16[8,16], index: 1, kind: input, shape index: {}]
  %s2 = inlined_call_operand.vmem [shape: f32[1,16], index: 2, kind: input, shape index: {}]
  %s3 = inlined_call_operand.vmem [shape: f32[3,3,16], index: 3, kind: input, shape index: {}]
  %s4 = inlined_call_operand.vmem [shape: f32[1,1,16], index: 4, kind: input, shape index: {}]
  %s5 = inlined_call_operand.hbm [shape: bf16[2,16,16,16], index: 5, kind: output, shape index: {0}]
  %s6 = inlined_call_operand.hbm [shape: f32[2,1,16], index: 6, kind: output, shape index: {1}]
  %7 = xla_tuple %s5, %s6
  %s8 = sld [smem:[#allocation0]]
  $region61: #{tpu_custom_call.1} parent=0
    _
  %s10 = ssub.s32 1, %s8
  %s11 = scalar_select 0, %s10, %s8
  $region1: #{tpu_custom_call.1} parent=0
    #allocation3 [shape = 'u8[131072]{0}', space=vmem, size = 0x20000, scoped, tag = 'output window, operand 0']
    #allocation4 [shape = 's32[2]{0}', space=sflag, size = 0x8, scoped, tag = 'scoped memory for tpu_custom_call.1']
    #allocation5 [shape = 'u8[1024]{0}', space=vmem, size = 0x400, scoped, tag = 'output window, operand 1']
    #allocation6 [shape = 's32[2]{0}', space=sflag, size = 0x8, scoped, tag = 'scoped memory for tpu_custom_call.1']
    %12 = vsyncpa [#allocation4], 0
    %s13 = scalar_lea.sflag [#allocation4], 1
    %14 = vsyncpa %s13, 0
    %15 = vsyncpa [#allocation6], 0
    %s16 = scalar_lea.sflag [#allocation6], 1
    %17 = vsyncpa %s16, 0
    loop: start=0, step=1, limit=4
    $region2: #{tpu_custom_call.1} parent=1 // loop_pre_header
      _
    $region3: #{tpu_custom_call.1} parent=1 // loop_header
      %s19 = sphi 0, %s23
      %p20 = scmp.ge.s32.totalorder %s19, 4
      %s29 = sphi 0, %s31
      %s32 = sphi 0, %s29
      %s33 = sphi 0, %s32
      %s49 = sphi 0, %s33
      %s53 = sphi 0, %s53
      %s55 = sphi 0, %s53
      %s56 = sphi 0, %s55
      %s70 = sphi 0, %s56
      %s74 = sphi 0, %s74
      %s76 = sphi 0, %s74
      %s77 = sphi 0, %s76
      %s91 = sphi 0, %s77
      %s95 = sphi 0, %s95
      %s97 = sphi 0, %s95
      %s98 = sphi 0, %s97
      %s112 = sphi 0, %s98
      %s116 = sphi 0, %s116
      %s118 = sphi 0, %s116
      %s119 = sphi 0, %s118
      %s133 = sphi 0, %s119
      %s139 = sphi 0, %s141
      %s142 = sphi 0, %s139
      %s143 = sphi 0, %s142
      %s159 = sphi 0, %s143
      %s165 = sphi 0, %s167
      %s168 = sphi 0, %s165
      %s169 = sphi 0, %s168
      %s185 = sphi 0, %s169
    $region4: #{tpu_custom_call.1} parent=1 // loop_header_branch
      %22 = sbr.rel (%p20) target = $region8
    $region5: #{tpu_custom_call.1} parent=1 // loop_body
      %s24 = ssub.s32 %s19, 1
      %s25 = ssub.s32 %s19, 2
      %s26 = sadd.s32 %s19, 1
      %s27 = ssub.s32 %s19, %s26
      %p28 = scmp.eq.s32.totalorder %s27, 0
      %s30 = sadd.s32 %s29, 1
      %s31 = scalar_select %p28, %s29, %s30
      %p34 = pneg %p28
      %p35 = scmp.eq.s32.totalorder %s19, 1
      %p36 = por %p34, %p35
      %p37 = scmp.ne.s32.totalorder %s29, %s32
      %p38 = scmp.eq.s32.totalorder %s19, 0
      %p39 = por %p37, %p38
      %p40 = scmp.ne.s32.totalorder %s29, %s32
      %p41 = scmp.eq.s32.totalorder %s24, 1
      %p42 = por %p40, %p41
      %p43 = scmp.ne.s32.totalorder %s32, %s33
      %p44 = scmp.eq.s32.totalorder %s24, 0
      %p45 = por %p43, %p44
      %p46 = scmp.ne.s32.totalorder %s32, %s33
      %p47 = scmp.eq.s32.totalorder %s25, 1
      %p48 = por %p46, %p47
      %p50 = scmp.ne.s32.totalorder %s33, %s49
      %p51 = scmp.eq.s32.totalorder %s25, 0
      %p52 = por %p50, %p51
      %s54 = sadd.s32 %s53, 1
      %p57 = scmp.eq.s32.totalorder %s19, 1
      %p58 = scmp.ne.s32.totalorder %s53, %s55
      %p59 = scmp.eq.s32.totalorder %s19, 0
      %p60 = por %p58, %p59
      %p61 = scmp.ne.s32.totalorder %s53, %s55
      %p62 = scmp.eq.s32.totalorder %s24, 1
      %p63 = por %p61, %p62
      %p64 = scmp.ne.s32.totalorder %s55, %s56
      %p65 = scmp.eq.s32.totalorder %s24, 0
      %p66 = por %p64, %p65
      %p67 = scmp.ne.s32.totalorder %s55, %s56
      %p68 = scmp.eq.s32.totalorder %s25, 1
      %p69 = por %p67, %p68
      %p71 = scmp.ne.s32.totalorder %s56, %s70
      %p72 = scmp.eq.s32.totalorder %s25, 0
      %p73 = por %p71, %p72
      %s75 = sadd.s32 %s74, 1
      %p78 = scmp.eq.s32.totalorder %s19, 1
      %p79 = scmp.ne.s32.totalorder %s74, %s76
      %p80 = scmp.eq.s32.totalorder %s19, 0
      %p81 = por %p79, %p80
      %p82 = scmp.ne.s32.totalorder %s74, %s76
      %p83 = scmp.eq.s32.totalorder %s24, 1
      %p84 = por %p82, %p83
      %p85 = scmp.ne.s32.totalorder %s76, %s77
      %p86 = scmp.eq.s32.totalorder %s24, 0
      %p87 = por %p85, %p86
      %p88 = scmp.ne.s32.totalorder %s76, %s77
      %p89 = scmp.eq.s32.totalorder %s25, 1
      %p90 = por %p88, %p89
      %p92 = scmp.ne.s32.totalorder %s77, %s91
      %p93 = scmp.eq.s32.totalorder %s25, 0
      %p94 = por %p92, %p93
      %s96 = sadd.s32 %s95, 1
      %p99 = scmp.eq.s32.totalorder %s19, 1
      %p100 = scmp.ne.s32.totalorder %s95, %s97
      %p101 = scmp.eq.s32.totalorder %s19, 0
      %p102 = por %p100, %p101
      %p103 = scmp.ne.s32.totalorder %s95, %s97
      %p104 = scmp.eq.s32.totalorder %s24, 1
      %p105 = por %p103, %p104
      %p106 = scmp.ne.s32.totalorder %s97, %s98
      %p107 = scmp.eq.s32.totalorder %s24, 0
      %p108 = por %p106, %p107
      %p109 = scmp.ne.s32.totalorder %s97, %s98
      %p110 = scmp.eq.s32.totalorder %s25, 1
      %p111 = por %p109, %p110
      %p113 = scmp.ne.s32.totalorder %s98, %s112
      %p114 = scmp.eq.s32.totalorder %s25, 0
      %p115 = por %p113, %p114
      %s117 = sadd.s32 %s116, 1
      %p120 = scmp.eq.s32.totalorder %s19, 1
      %p121 = scmp.ne.s32.totalorder %s116, %s118
      %p122 = scmp.eq.s32.totalorder %s19, 0
      %p123 = por %p121, %p122
      %p124 = scmp.ne.s32.totalorder %s116, %s118
      %p125 = scmp.eq.s32.totalorder %s24, 1
      %p126 = por %p124, %p125
      %p127 = scmp.ne.s32.totalorder %s118, %s119
      %p128 = scmp.eq.s32.totalorder %s24, 0
      %p129 = por %p127, %p128
      %p130 = scmp.ne.s32.totalorder %s118, %s119
      %p131 = scmp.eq.s32.totalorder %s25, 1
      %p132 = por %p130, %p131
      %p134 = scmp.ne.s32.totalorder %s119, %s133
      %p135 = scmp.eq.s32.totalorder %s25, 0
      %p136 = por %p134, %p135
      %s137 = ssub.s32 %s19, %s26
      %p138 = scmp.eq.s32.totalorder %s137, 0
      %s140 = sadd.s32 %s139, 1
      %s141 = scalar_select %p138, %s139, %s140
      %p144 = pneg %p138
      %p145 = scmp.eq.s32.totalorder %s19, 1
      %p146 = por %p144, %p145
      %p147 = scmp.ne.s32.totalorder %s139, %s142
      %p148 = scmp.eq.s32.totalorder %s19, 0
      %p149 = por %p147, %p148
      %p150 = scmp.ne.s32.totalorder %s139, %s142
      %p151 = scmp.eq.s32.totalorder %s24, 1
      %p152 = por %p150, %p151
      %p153 = scmp.ne.s32.totalorder %s142, %s143
      %p154 = scmp.eq.s32.totalorder %s24, 0
      %p155 = por %p153, %p154
      %p156 = scmp.ne.s32.totalorder %s142, %s143
      %p157 = scmp.eq.s32.totalorder %s25, 1
      %p158 = por %p156, %p157
      %p160 = scmp.ne.s32.totalorder %s143, %s159
      %p161 = scmp.eq.s32.totalorder %s25, 0
      %p162 = por %p160, %p161
      %s163 = ssub.s32 %s19, %s26
      %p164 = scmp.eq.s32.totalorder %s163, 0
      %s166 = sadd.s32 %s165, 1
      %s167 = scalar_select %p164, %s165, %s166
      %p170 = pneg %p164
      %p171 = scmp.eq.s32.totalorder %s19, 1
      %p172 = por %p170, %p171
      %p173 = scmp.ne.s32.totalorder %s165, %s168
      %p174 = scmp.eq.s32.totalorder %s19, 0
      %p175 = por %p173, %p174
      %p176 = scmp.ne.s32.totalorder %s165, %s168
      %p177 = scmp.eq.s32.totalorder %s24, 1
      %p178 = por %p176, %p177
      %p179 = scmp.ne.s32.totalorder %s168, %s169
      %p180 = scmp.eq.s32.totalorder %s24, 0
      %p181 = por %p179, %p180
      %p182 = scmp.ne.s32.totalorder %s168, %s169
      %p183 = scmp.eq.s32.totalorder %s25, 1
      %p184 = por %p182, %p183
      %p186 = scmp.ne.s32.totalorder %s169, %s185
      %p187 = scmp.eq.s32.totalorder %s25, 0
      %p188 = por %p186, %p187
      %p189 = scmp.le.s32.totalorder 1, %s19
      %p190 = scmp.lt.s32.totalorder %s19, 3
      %p191 = pnand %p189, %p190
      %p192 = pneg %p191
      // Predicated region
      $region9: #{tpu_custom_call.1} parent=5 // pred_check
        _
      $region10: #{tpu_custom_call.1} parent=5 // pred_check_branch
        %194 = sbr.rel (%p191) target = $region12
      $region11: #{tpu_custom_call.1} parent=5 // pred_region
        %s195 = ssub.s32 %s19, 1
        // Predicated region
        $region13: #{tpu_custom_call.1} parent=11 // pred_check
          %p196 = pneg %p66
        $region14: #{tpu_custom_call.1} parent=11 // pred_check_branch
          %198 = sbr.rel (%p196) target = $region16
        $region15: #{tpu_custom_call.1} parent=11 // pred_region
          _
        $region16: #{tpu_custom_call.1} parent=11 // pred_fallthru
          _
        // Predicated region
        $region17: #{tpu_custom_call.1} parent=11 // pred_check
          %p199 = pneg %p87
        $region18: #{tpu_custom_call.1} parent=11 // pred_check_branch
          %201 = sbr.rel (%p199) target = $region20
        $region19: #{tpu_custom_call.1} parent=11 // pred_region
          _
        $region20: #{tpu_custom_call.1} parent=11 // pred_fallthru
          _
        // Predicated region
        $region21: #{tpu_custom_call.1} parent=11 // pred_check
          %p202 = pneg %p108
        $region22: #{tpu_custom_call.1} parent=11 // pred_check_branch
          %204 = sbr.rel (%p202) target = $region24
        $region23: #{tpu_custom_call.1} parent=11 // pred_region
          _
        $region24: #{tpu_custom_call.1} parent=11 // pred_fallthru
          _
        // Predicated region
        $region25: #{tpu_custom_call.1} parent=11 // pred_check
          %p205 = pneg %p129
        $region26: #{tpu_custom_call.1} parent=11 // pred_check_branch
          %207 = sbr.rel (%p205) target = $region28
        $region27: #{tpu_custom_call.1} parent=11 // pred_region
          _
        $region28: #{tpu_custom_call.1} parent=11 // pred_fallthru
          _
      $region12: #{tpu_custom_call.1} parent=5 // pred_fallthru
        _
      %p208 = scmp.lt.s32.totalorder %s19, 2
      // Predicated region
      $region29: #{tpu_custom_call.1} parent=5 // pred_check
        %p209 = pneg %p208
      $region30: #{tpu_custom_call.1} parent=5 // pred_check_branch
        %211 = sbr.rel (%p209) target = $region32
      $region31: #{tpu_custom_call.1} parent=5 // pred_region
        // Predicated region
        $region33: #{tpu_custom_call.1} parent=31 // pred_check
          %p212 = pneg %p39
        $region34: #{tpu_custom_call.1} parent=31 // pred_check_branch
          %214 = sbr.rel (%p212) target = $region36
        $region35: #{tpu_custom_call.1} parent=31 // pred_region
          %p215 = scmp.lt.s32.totalorder %s19, 1
          %s216 = scalar_select %p215, %s19, 1
          %s217 = smul.addr %s216, 32
          %s218 = smul.addr %s217, 8
          %s219 = scalar_lea.vmem %s0, %s218
        $region36: #{tpu_custom_call.1} parent=31 // pred_fallthru
          _
      $region32: #{tpu_custom_call.1} parent=5 // pred_fallthru
        _
      %p220 = scmp.le.s32.totalorder 1, %s19
      %p221 = scmp.lt.s32.totalorder %s19, 3
      %p222 = pnand %p220, %p221
      %p223 = pneg %p222
      // Predicated region
      $region37: #{tpu_custom_call.1} parent=5 // pred_check
        _
      $region38: #{tpu_custom_call.1} parent=5 // pred_check_branch
        %225 = sbr.rel (%p222) target = $region40
      $region39: #{tpu_custom_call.1} parent=5 // pred_region
        %s226 = ssub.s32 %s19, 1
        %p227 = scmp.lt.s32.totalorder %s24, 1
        %s228 = scalar_select %p227, %s24, 1
        %s229 = smul.addr %s228, 32
        %s230 = smul.addr %s229, 8
        %s231 = scalar_lea.vmem %s0, %s230
        %p232 = pneg %p45
        %p233 = pneg %p42
        %p234 = pneg %p66
        %p235 = pneg %p63
        %p236 = pneg %p87
        %p237 = pneg %p84
        %p238 = pneg %p108
        %p239 = pneg %p105
        %p240 = pneg %p129
        %p241 = pneg %p126
        %p242 = pneg %p155
        %p243 = pneg %p152
        %s244 = sand.u32 %s142, 1
        %s245 = scalar_lea.sflag [#allocation4], %s244
        %s246 = sand.u32 %s142, 1
        %s247 = smul.addr %s246, 128
        %s248 = scalar_lea.vmem [#allocation3], %s247
        %p249 = pneg %p181
        %p250 = pneg %p178
        %s251 = sand.u32 %s168, 1
        %s252 = scalar_lea.sflag [#allocation6], %s251
        %s253 = sand.u32 %s168, 1
        %s254 = scalar_lea.vmem [#allocation5], %s253
        %p255 = scmp.lt.s32.totalorder %s24, 1
        %s256 = scalar_select %p255, %s24, 1
        %s257 = smul.addr %s256, 32
        %s258 = smul.addr %s257, 8
        %s259 = scalar_lea.vmem %s0, %s258
        %vm261 = vcmask 130048
        %262 = vst.msk [vmem:[#allocation2] sm:$0xff] %vm261, 0.0
        %263 = vst.msk [vmem:[#allocation2 + $0x8] sm:$0xff] %vm261, 0.0
        %vm264 = vcmask 123904
        %265 = vst.msk [vmem:[#allocation2 + $0x10] sm:$0x3] %vm264, 0.0
        %s266 = scalar_lea.vmem [#allocation2], 408
        %267 = vst.msk [vmem:[%s266] sm:$0xff] %vm261, 0.0
        %268 = vst.msk [vmem:[%s266 + $0x8] sm:$0xff] %vm261, 0.0
        %269 = vst.msk [vmem:[%s266 + $0x10] sm:$0x3] %vm264, 0.0
        %vm270 = vcmask 122880
        %271 = vst.msk [vmem:[#allocation2] sm:$0x1] %vm270, 0.0
        %272 = vst.msk [vmem:[#allocation2 + $0x18] sm:$0x1] %vm270, 0.0
        %273 = vst.msk [vmem:[#allocation2 + $0x30] sm:$0x1] %vm270, 0.0
        %274 = vst.msk [vmem:[#allocation2 + $0x48] sm:$0x1] %vm270, 0.0
        %275 = vst.msk [vmem:[#allocation2 + $0x60] sm:$0x1] %vm270, 0.0
        %276 = vst.msk [vmem:[#allocation2 + $0x78] sm:$0x1] %vm270, 0.0
        %277 = vst.msk [vmem:[#allocation2 + $0x90] sm:$0x1] %vm270, 0.0
        %278 = vst.msk [vmem:[#allocation2 + $0xa8] sm:$0x1] %vm270, 0.0
        %279 = vst.msk [vmem:[#allocation2 + $0xc0] sm:$0x1] %vm270, 0.0
        %280 = vst.msk [vmem:[#allocation2 + $0xd8] sm:$0x1] %vm270, 0.0
        %281 = vst.msk [vmem:[#allocation2 + $0xf0] sm:$0x1] %vm270, 0.0
        %282 = vst.msk [vmem:[#allocation2 + $0x108] sm:$0x1] %vm270, 0.0
        %283 = vst.msk [vmem:[#allocation2 + $0x120] sm:$0x1] %vm270, 0.0
        %284 = vst.msk [vmem:[#allocation2 + $0x138] sm:$0x1] %vm270, 0.0
        %285 = vst.msk [vmem:[#allocation2 + $0x150] sm:$0x1] %vm270, 0.0
        %286 = vst.msk [vmem:[#allocation2 + $0x168] sm:$0x1] %vm270, 0.0
        %287 = vst.msk [vmem:[#allocation2 + $0x180] sm:$0x1] %vm270, 0.0
        %288 = vst.msk [vmem:[#allocation2 + $0x198] sm:$0x1] %vm270, 0.0
        %289 = vst.msk [vmem:[#allocation2 + $0x11] sm:$0x1] %vm270, 0.0
        %290 = vst.msk [vmem:[#allocation2 + $0x29] sm:$0x1] %vm270, 0.0
        %291 = vst.msk [vmem:[#allocation2 + $0x41] sm:$0x1] %vm270, 0.0
        %292 = vst.msk [vmem:[#allocation2 + $0x59] sm:$0x1] %vm270, 0.0
        %293 = vst.msk [vmem:[#allocation2 + $0x71] sm:$0x1] %vm270, 0.0
        %294 = vst.msk [vmem:[#allocation2 + $0x89] sm:$0x1] %vm270, 0.0
        %295 = vst.msk [vmem:[#allocation2 + $0xa1] sm:$0x1] %vm270, 0.0
        %296 = vst.msk [vmem:[#allocation2 + $0xb9] sm:$0x1] %vm270, 0.0
        %297 = vst.msk [vmem:[#allocation2 + $0xd1] sm:$0x1] %vm270, 0.0
        %298 = vst.msk [vmem:[#allocation2 + $0xe9] sm:$0x1] %vm270, 0.0
        %299 = vst.msk [vmem:[#allocation2 + $0x101] sm:$0x1] %vm270, 0.0
        %300 = vst.msk [vmem:[#allocation2 + $0x119] sm:$0x1] %vm270, 0.0
        %301 = vst.msk [vmem:[#allocation2 + $0x131] sm:$0x1] %vm270, 0.0
        %302 = vst.msk [vmem:[#allocation2 + $0x149] sm:$0x1] %vm270, 0.0
        %303 = vst.msk [vmem:[#allocation2 + $0x161] sm:$0x1] %vm270, 0.0
        %304 = vst.msk [vmem:[#allocation2 + $0x179] sm:$0x1] %vm270, 0.0
        %305 = vst.msk [vmem:[#allocation2 + $0x191] sm:$0x1] %vm270, 0.0
        %306 = vst.msk [vmem:[#allocation2 + $0x1a9] sm:$0x1] %vm270, 0.0
        %v307 = vld [vmem:[%s259] sm:$0xff]
        %v308 = vld [vmem:[%s259 + $0x8] sm:$0xff]
        %v309 = vld [vmem:[%s259 + $0x10] sm:$0xff]
        %v310 = vld [vmem:[%s259 + $0x18] sm:$0xff]
        %v311 = vld [vmem:[%s259 + $0x20] sm:$0xff]
        %v312 = vld [vmem:[%s259 + $0x28] sm:$0xff]
        %v313 = vld [vmem:[%s259 + $0x30] sm:$0xff]
        %v314 = vld [vmem:[%s259 + $0x38] sm:$0xff]
        %v315 = vld [vmem:[%s259 + $0x40] sm:$0xff]
        %v316 = vld [vmem:[%s259 + $0x48] sm:$0xff]
        %v317 = vld [vmem:[%s259 + $0x50] sm:$0xff]
        %v318 = vld [vmem:[%s259 + $0x58] sm:$0xff]
        %v319 = vld [vmem:[%s259 + $0x60] sm:$0xff]
        %v320 = vld [vmem:[%s259 + $0x68] sm:$0xff]
        %v321 = vld [vmem:[%s259 + $0x70] sm:$0xff]
        %v322 = vld [vmem:[%s259 + $0x78] sm:$0xff]
        %v323 = vld [vmem:[%s259 + $0x80] sm:$0xff]
        %v324 = vld [vmem:[%s259 + $0x88] sm:$0xff]
        %v325 = vld [vmem:[%s259 + $0x90] sm:$0xff]
        %v326 = vld [vmem:[%s259 + $0x98] sm:$0xff]
        %v327 = vld [vmem:[%s259 + $0xa0] sm:$0xff]
        %v328 = vld [vmem:[%s259 + $0xa8] sm:$0xff]
        %v329 = vld [vmem:[%s259 + $0xb0] sm:$0xff]
        %v330 = vld [vmem:[%s259 + $0xb8] sm:$0xff]
        %v331 = vld [vmem:[%s259 + $0xc0] sm:$0xff]
        %v332 = vld [vmem:[%s259 + $0xc8] sm:$0xff]
        %v333 = vld [vmem:[%s259 + $0xd0] sm:$0xff]
        %v334 = vld [vmem:[%s259 + $0xd8] sm:$0xff]
        %v335 = vld [vmem:[%s259 + $0xe0] sm:$0xff]
        %v336 = vld [vmem:[%s259 + $0xe8] sm:$0xff]
        %v337 = vld [vmem:[%s259 + $0xf0] sm:$0xff]
        %v338 = vld [vmem:[%s259 + $0xf8] sm:$0xff]
        %v339 = vpack.c.bf16 %v308, %v307
        %v340 = vpack.c.bf16 %v310, %v309
        %v341 = vpack.c.bf16 %v312, %v311
        %v342 = vpack.c.bf16 %v314, %v313
        %v343 = vpack.c.bf16 %v316, %v315
        %v344 = vpack.c.bf16 %v318, %v317
        %v345 = vpack.c.bf16 %v320, %v319
        %v346 = vpack.c.bf16 %v322, %v321
        %v347 = vpack.c.bf16 %v324, %v323
        %v348 = vpack.c.bf16 %v326, %v325
        %v349 = vpack.c.bf16 %v328, %v327
        %v350 = vpack.c.bf16 %v330, %v329
        %v351 = vpack.c.bf16 %v332, %v331
        %v352 = vpack.c.bf16 %v334, %v333
        %v353 = vpack.c.bf16 %v336, %v335
        %v354 = vpack.c.bf16 %v338, %v337
        %v355 = vld [vmem:[%s1] sm:$0xf]
        %v356 = vld [vmem:[%s2] sm:$0x1]
        %v358 = vlaneseq
        %v359 = vshrl.u32 %v358, 7
        %v360 = vsub.s32 0, %v359
        %v361 = vrot.slane %v356, %v360
        %vm363 = vcmask 64512
        %v365 = vsel %vm363, %v339, 0
        %v368 = vsel %vm363, %v340, 0
        %v371 = vsel %vm363, %v341, 0
        %v374 = vsel %vm363, %v342, 0
        %v377 = vsel %vm363, %v343, 0
        %v380 = vsel %vm363, %v344, 0
        %v383 = vsel %vm363, %v345, 0
        %v386 = vsel %vm363, %v346, 0
        %v389 = vsel %vm363, %v347, 0
        %v392 = vsel %vm363, %v348, 0
        %v395 = vsel %vm363, %v349, 0
        %v398 = vsel %vm363, %v350, 0
        %v401 = vsel %vm363, %v351, 0
        %v404 = vsel %vm363, %v352, 0
        %v407 = vsel %vm363, %v353, 0
        %v410 = vsel %vm363, %v354, 0
        %vm412 = vcmask 1043456
        %v414 = vsel %vm412, %v355, 0
        %416 = vmatprep.subr.bf16.mxu0 0
        %417 = vmatpush1.bf16.msra.mxu0 0
        %418 = vmatprep.subr.bf16.mxu0 0
        %419 = vmatpush1.bf16.msra.mxu0 0
        %420 = vmatprep.subr.bf16.mxu0 0
        %421 = vmatpush1.bf16.msra.mxu0 0
        %422 = vmatprep.subr.bf16.mxu0 0
        %423 = vmatpush1.bf16.msra.mxu0 0
        %424 = vmatprep.subr.bf16.mxu0 0
        %425 = vmatpush1.bf16.msra.mxu0 0
        %426 = vmatprep.subr.bf16.mxu0 0
        %427 = vmatpush1.bf16.msra.mxu0 0
        %428 = vmatprep.subr.bf16.mxu0 0
        %429 = vmatpush1.bf16.msra.mxu0 0
        %430 = vmatprep.subr.bf16.mxu0 0
        %431 = vmatpush1.bf16.msra.mxu0 %v414
        %432 = vmatprep.subr.bf16.mxu0 0
        %433 = vmatpush2.bf16.msra.mxu0 0
        %434 = vmatprep.subr.bf16.mxu0 0
        %435 = vmatpush2.bf16.msra.mxu0 0
        %436 = vmatprep.subr.bf16.mxu0 0
        %437 = vmatpush2.bf16.msra.mxu0 0
        %438 = vmatprep.subr.bf16.mxu0 0
        %439 = vmatpush2.bf16.msra.mxu0 0
        %440 = vmatprep.subr.bf16.mxu0 0
        %441 = vmatpush2.bf16.msra.mxu0 0
        %442 = vmatprep.subr.bf16.mxu0 0
        %443 = vmatpush2.bf16.msra.mxu0 0
        %444 = vmatprep.subr.bf16.mxu0 0
        %445 = vmatpush2.bf16.msra.mxu0 0
        %446 = vmatprep.subr.bf16.mxu0 0
        %447 = vmatpush2.bf16.msra.mxu0 0
        %448 = vmatprep.mubr.bf16.mxu0 0
        %449 = vmatmul.mubr.bf16.gmra.mxu0 %v365
        %v450 = vpop.f32.mrf.mxu0
        %v451 = vadd.f32 %v361, %v450
        %v452 = vpop.f32.mrf.mxu0
        %v453 = vpop.f32.mrf.mxu0
        %v454 = vadd.f32 %v361, %v453
        %v455 = vpop.f32.mrf.mxu0
        %456 = vmatprep.mubr.bf16.mxu0 0
        %457 = vmatmul.mubr.bf16.gmra.mxu0 %v368
        %v458 = vpop.f32.mrf.mxu0
        %v459 = vadd.f32 %v361, %v458
        %v460 = vpop.f32.mrf.mxu0
        %v461 = vpop.f32.mrf.mxu0
        %v462 = vadd.f32 %v361, %v461
        %v463 = vpop.f32.mrf.mxu0
        %464 = vmatprep.mubr.bf16.mxu0 0
        %465 = vmatmul.mubr.bf16.gmra.mxu0 %v371
        %v466 = vpop.f32.mrf.mxu0
        %v467 = vadd.f32 %v361, %v466
        %v468 = vpop.f32.mrf.mxu0
        %v469 = vpop.f32.mrf.mxu0
        %v470 = vadd.f32 %v361, %v469
        %v471 = vpop.f32.mrf.mxu0
        %472 = vmatprep.mubr.bf16.mxu0 0
        %473 = vmatmul.mubr.bf16.gmra.mxu0 %v374
        %v474 = vpop.f32.mrf.mxu0
        %v475 = vadd.f32 %v361, %v474
        %v476 = vpop.f32.mrf.mxu0
        %v477 = vpop.f32.mrf.mxu0
        %v478 = vadd.f32 %v361, %v477
        %v479 = vpop.f32.mrf.mxu0
        %480 = vmatprep.mubr.bf16.mxu0 0
        %481 = vmatmul.mubr.bf16.gmra.mxu0 %v377
        %v482 = vpop.f32.mrf.mxu0
        %v483 = vadd.f32 %v361, %v482
        %v484 = vpop.f32.mrf.mxu0
        %v485 = vpop.f32.mrf.mxu0
        %v486 = vadd.f32 %v361, %v485
        %v487 = vpop.f32.mrf.mxu0
        %488 = vmatprep.mubr.bf16.mxu0 0
        %489 = vmatmul.mubr.bf16.gmra.mxu0 %v380
        %v490 = vpop.f32.mrf.mxu0
        %v491 = vadd.f32 %v361, %v490
        %v492 = vpop.f32.mrf.mxu0
        %v493 = vpop.f32.mrf.mxu0
        %v494 = vadd.f32 %v361, %v493
        %v495 = vpop.f32.mrf.mxu0
        %496 = vmatprep.mubr.bf16.mxu0 0
        %497 = vmatmul.mubr.bf16.gmra.mxu0 %v383
        %v498 = vpop.f32.mrf.mxu0
        %v499 = vadd.f32 %v361, %v498
        %v500 = vpop.f32.mrf.mxu0
        %v501 = vpop.f32.mrf.mxu0
        %v502 = vadd.f32 %v361, %v501
        %v503 = vpop.f32.mrf.mxu0
        %504 = vmatprep.mubr.bf16.mxu0 0
        %505 = vmatmul.mubr.bf16.gmra.mxu0 %v386
        %v506 = vpop.f32.mrf.mxu0
        %v507 = vadd.f32 %v361, %v506
        %v508 = vpop.f32.mrf.mxu0
        %v509 = vpop.f32.mrf.mxu0
        %v510 = vadd.f32 %v361, %v509
        %v511 = vpop.f32.mrf.mxu0
        %512 = vmatprep.mubr.bf16.mxu0 0
        %513 = vmatmul.mubr.bf16.gmra.mxu0 %v389
        %v514 = vpop.f32.mrf.mxu0
        %v515 = vadd.f32 %v361, %v514
        %v516 = vpop.f32.mrf.mxu0
        %v517 = vpop.f32.mrf.mxu0
        %v518 = vadd.f32 %v361, %v517
        %v519 = vpop.f32.mrf.mxu0
        %520 = vmatprep.mubr.bf16.mxu0 0
        %521 = vmatmul.mubr.bf16.gmra.mxu0 %v392
        %v522 = vpop.f32.mrf.mxu0
        %v523 = vadd.f32 %v361, %v522
        %v524 = vpop.f32.mrf.mxu0
        %v525 = vpop.f32.mrf.mxu0
        %v526 = vadd.f32 %v361, %v525
        %v527 = vpop.f32.mrf.mxu0
        %528 = vmatprep.mubr.bf16.mxu0 0
        %529 = vmatmul.mubr.bf16.gmra.mxu0 %v395
        %v530 = vpop.f32.mrf.mxu0
        %v531 = vadd.f32 %v361, %v530
        %v532 = vpop.f32.mrf.mxu0
        %v533 = vpop.f32.mrf.mxu0
        %v534 = vadd.f32 %v361, %v533
        %v535 = vpop.f32.mrf.mxu0
        %536 = vmatprep.mubr.bf16.mxu0 0
        %537 = vmatmul.mubr.bf16.gmra.mxu0 %v398
        %v538 = vpop.f32.mrf.mxu0
        %v539 = vadd.f32 %v361, %v538
        %v540 = vpop.f32.mrf.mxu0
        %v541 = vpop.f32.mrf.mxu0
        %v542 = vadd.f32 %v361, %v541
        %v543 = vpop.f32.mrf.mxu0
        %544 = vmatprep.mubr.bf16.mxu0 0
        %545 = vmatmul.mubr.bf16.gmra.mxu0 %v401
        %v546 = vpop.f32.mrf.mxu0
        %v547 = vadd.f32 %v361, %v546
        %v548 = vpop.f32.mrf.mxu0
        %v549 = vpop.f32.mrf.mxu0
        %v550 = vadd.f32 %v361, %v549
        %v551 = vpop.f32.mrf.mxu0
        %552 = vmatprep.mubr.bf16.mxu0 0
        %553 = vmatmul.mubr.bf16.gmra.mxu0 %v404
        %v554 = vpop.f32.mrf.mxu0
        %v555 = vadd.f32 %v361, %v554
        %v556 = vpop.f32.mrf.mxu0
        %v557 = vpop.f32.mrf.mxu0
        %v558 = vadd.f32 %v361, %v557
        %v559 = vpop.f32.mrf.mxu0
        %560 = vmatprep.mubr.bf16.mxu0 0
        %561 = vmatmul.mubr.bf16.gmra.mxu0 %v407
        %v562 = vpop.f32.mrf.mxu0
        %v563 = vadd.f32 %v361, %v562
        %v564 = vpop.f32.mrf.mxu0
        %v565 = vpop.f32.mrf.mxu0
        %v566 = vadd.f32 %v361, %v565
        %v567 = vpop.f32.mrf.mxu0
        %568 = vmatprep.mubr.bf16.mxu0 0
        %569 = vmatmul.mubr.bf16.gmra.mxu0 %v410
        %v570 = vpop.f32.mrf.mxu0
        %v571 = vadd.f32 %v361, %v570
        %v572 = vpop.f32.mrf.mxu0
        %v573 = vpop.f32.mrf.mxu0
        %v574 = vadd.f32 %v361, %v573
        %v575 = vpop.f32.mrf.mxu0
        %576 = vdwg.mxu0
        %v577 = vadd.f32 %v451, 3.0
        %v578 = vadd.f32 %v454, 3.0
        %v579 = vadd.f32 %v459, 3.0
        %v580 = vadd.f32 %v462, 3.0
        %v581 = vadd.f32 %v467, 3.0
        %v582 = vadd.f32 %v470, 3.0
        %v583 = vadd.f32 %v475, 3.0
        %v584 = vadd.f32 %v478, 3.0
        %v585 = vadd.f32 %v483, 3.0
        %v586 = vadd.f32 %v486, 3.0
        %v587 = vadd.f32 %v491, 3.0
        %v588 = vadd.f32 %v494, 3.0
        %v589 = vadd.f32 %v499, 3.0
        %v590 = vadd.f32 %v502, 3.0
        %v591 = vadd.f32 %v507, 3.0
        %v592 = vadd.f32 %v510, 3.0
        %v593 = vadd.f32 %v515, 3.0
        %v594 = vadd.f32 %v518, 3.0
        %v595 = vadd.f32 %v523, 3.0
        %v596 = vadd.f32 %v526, 3.0
        %v597 = vadd.f32 %v531, 3.0
        %v598 = vadd.f32 %v534, 3.0
        %v599 = vadd.f32 %v539, 3.0
        %v600 = vadd.f32 %v542, 3.0
        %v601 = vadd.f32 %v547, 3.0
        %v602 = vadd.f32 %v550, 3.0
        %v603 = vadd.f32 %v555, 3.0
        %v604 = vadd.f32 %v558, 3.0
        %v605 = vadd.f32 %v563, 3.0
        %v606 = vadd.f32 %v566, 3.0
        %v607 = vadd.f32 %v571, 3.0
        %v608 = vadd.f32 %v574, 3.0
        %v609 = vmax.f32 %v577, 0.0
        %v610 = vmax.f32 %v578, 0.0
        %v611 = vmax.f32 %v579, 0.0
        %v612 = vmax.f32 %v580, 0.0
        %v613 = vmax.f32 %v581, 0.0
        %v614 = vmax.f32 %v582, 0.0
        %v615 = vmax.f32 %v583, 0.0
        %v616 = vmax.f32 %v584, 0.0
        %v617 = vmax.f32 %v585, 0.0
        %v618 = vmax.f32 %v586, 0.0
        %v619 = vmax.f32 %v587, 0.0
        %v620 = vmax.f32 %v588, 0.0
        %v621 = vmax.f32 %v589, 0.0
        %v622 = vmax.f32 %v590, 0.0
        %v623 = vmax.f32 %v591, 0.0
        %v624 = vmax.f32 %v592, 0.0
        %v625 = vmax.f32 %v593, 0.0
        %v626 = vmax.f32 %v594, 0.0
        %v627 = vmax.f32 %v595, 0.0
        %v628 = vmax.f32 %v596, 0.0
        %v629 = vmax.f32 %v597, 0.0
        %v630 = vmax.f32 %v598, 0.0
        %v631 = vmax.f32 %v599, 0.0
        %v632 = vmax.f32 %v600, 0.0
        %v633 = vmax.f32 %v601, 0.0
        %v634 = vmax.f32 %v602, 0.0
        %v635 = vmax.f32 %v603, 0.0
        %v636 = vmax.f32 %v604, 0.0
        %v637 = vmax.f32 %v605, 0.0
        %v638 = vmax.f32 %v606, 0.0
        %v639 = vmax.f32 %v607, 0.0
        %v640 = vmax.f32 %v608, 0.0
        %v641 = vmin.f32 %v609, 6.0
        %v642 = vmin.f32 %v610, 6.0
        %v643 = vmin.f32 %v611, 6.0
        %v644 = vmin.f32 %v612, 6.0
        %v645 = vmin.f32 %v613, 6.0
        %v646 = vmin.f32 %v614, 6.0
        %v647 = vmin.f32 %v615, 6.0
        %v648 = vmin.f32 %v616, 6.0
        %v649 = vmin.f32 %v617, 6.0
        %v650 = vmin.f32 %v618, 6.0
        %v651 = vmin.f32 %v619, 6.0
        %v652 = vmin.f32 %v620, 6.0
        %v653 = vmin.f32 %v621, 6.0
        %v654 = vmin.f32 %v622, 6.0
        %v655 = vmin.f32 %v623, 6.0
        %v656 = vmin.f32 %v624, 6.0
        %v657 = vmin.f32 %v625, 6.0
        %v658 = vmin.f32 %v626, 6.0
        %v659 = vmin.f32 %v627, 6.0
        %v660 = vmin.f32 %v628, 6.0
        %v661 = vmin.f32 %v629, 6.0
        %v662 = vmin.f32 %v630, 6.0
        %v663 = vmin.f32 %v631, 6.0
        %v664 = vmin.f32 %v632, 6.0
        %v665 = vmin.f32 %v633, 6.0
        %v666 = vmin.f32 %v634, 6.0
        %v667 = vmin.f32 %v635, 6.0
        %v668 = vmin.f32 %v636, 6.0
        %v669 = vmin.f32 %v637, 6.0
        %v670 = vmin.f32 %v638, 6.0
        %v671 = vmin.f32 %v639, 6.0
        %v672 = vmin.f32 %v640, 6.0
        %v673 = vmul.f32 %v641, 0.16666667
        %v674 = vmul.f32 %v642, 0.16666667
        %v675 = vmul.f32 %v643, 0.16666667
        %v676 = vmul.f32 %v644, 0.16666667
        %v677 = vmul.f32 %v645, 0.16666667
        %v678 = vmul.f32 %v646, 0.16666667
        %v679 = vmul.f32 %v647, 0.16666667
        %v680 = vmul.f32 %v648, 0.16666667
        %v681 = vmul.f32 %v649, 0.16666667
        %v682 = vmul.f32 %v650, 0.16666667
        %v683 = vmul.f32 %v651, 0.16666667
        %v684 = vmul.f32 %v652, 0.16666667
        %v685 = vmul.f32 %v653, 0.16666667
        %v686 = vmul.f32 %v654, 0.16666667
        %v687 = vmul.f32 %v655, 0.16666667
        %v688 = vmul.f32 %v656, 0.16666667
        %v689 = vmul.f32 %v657, 0.16666667
        %v690 = vmul.f32 %v658, 0.16666667
        %v691 = vmul.f32 %v659, 0.16666667
        %v692 = vmul.f32 %v660, 0.16666667
        %v693 = vmul.f32 %v661, 0.16666667
        %v694 = vmul.f32 %v662, 0.16666667
        %v695 = vmul.f32 %v663, 0.16666667
        %v696 = vmul.f32 %v664, 0.16666667
        %v697 = vmul.f32 %v665, 0.16666667
        %v698 = vmul.f32 %v666, 0.16666667
        %v699 = vmul.f32 %v667, 0.16666667
        %v700 = vmul.f32 %v668, 0.16666667
        %v701 = vmul.f32 %v669, 0.16666667
        %v702 = vmul.f32 %v670, 0.16666667
        %v703 = vmul.f32 %v671, 0.16666667
        %v704 = vmul.f32 %v672, 0.16666667
        %v705 = vmul.f32 %v451, %v673
        %v706 = vmul.f32 %v454, %v674
        %v707 = vmul.f32 %v459, %v675
        %v708 = vmul.f32 %v462, %v676
        %v709 = vmul.f32 %v467, %v677
        %v710 = vmul.f32 %v470, %v678
        %v711 = vmul.f32 %v475, %v679
        %v712 = vmul.f32 %v478, %v680
        %v713 = vmul.f32 %v483, %v681
        %v714 = vmul.f32 %v486, %v682
        %v715 = vmul.f32 %v491, %v683
        %v716 = vmul.f32 %v494, %v684
        %v717 = vmul.f32 %v499, %v685
        %v718 = vmul.f32 %v502, %v686
        %v719 = vmul.f32 %v507, %v687
        %v720 = vmul.f32 %v510, %v688
        %v721 = vmul.f32 %v515, %v689
        %v722 = vmul.f32 %v518, %v690
        %v723 = vmul.f32 %v523, %v691
        %v724 = vmul.f32 %v526, %v692
        %v725 = vmul.f32 %v531, %v693
        %v726 = vmul.f32 %v534, %v694
        %v727 = vmul.f32 %v539, %v695
        %v728 = vmul.f32 %v542, %v696
        %v729 = vmul.f32 %v547, %v697
        %v730 = vmul.f32 %v550, %v698
        %v731 = vmul.f32 %v555, %v699
        %v732 = vmul.f32 %v558, %v700
        %v733 = vmul.f32 %v563, %v701
        %v734 = vmul.f32 %v566, %v702
        %v735 = vmul.f32 %v571, %v703
        %v736 = vmul.f32 %v574, %v704
        %s737 = scalar_lea.vmem [#allocation2], 24
        %738 = vst.msk [vmem:[%s737 + $0x1] sm:$0xff] %vm261, %v705
        %739 = vst.msk [vmem:[%s737 + $0x9] sm:$0xff] %vm261, %v706
        %740 = vst.msk [vmem:[%s737 + $0x19] sm:$0xff] %vm261, %v707
        %741 = vst.msk [vmem:[%s737 + $0x21] sm:$0xff] %vm261, %v708
        %742 = vst.msk [vmem:[%s737 + $0x31] sm:$0xff] %vm261, %v709
        %743 = vst.msk [vmem:[%s737 + $0x39] sm:$0xff] %vm261, %v710
        %744 = vst.msk [vmem:[%s737 + $0x49] sm:$0xff] %vm261, %v711
        %745 = vst.msk [vmem:[%s737 + $0x51] sm:$0xff] %vm261, %v712
        %746 = vst.msk [vmem:[%s737 + $0x61] sm:$0xff] %vm261, %v713
        %747 = vst.msk [vmem:[%s737 + $0x69] sm:$0xff] %vm261, %v714
        %748 = vst.msk [vmem:[%s737 + $0x79] sm:$0xff] %vm261, %v715
        %749 = vst.msk [vmem:[%s737 + $0x81] sm:$0xff] %vm261, %v716
        %750 = vst.msk [vmem:[%s737 + $0x91] sm:$0xff] %vm261, %v717
        %751 = vst.msk [vmem:[%s737 + $0x99] sm:$0xff] %vm261, %v718
        %752 = vst.msk [vmem:[%s737 + $0xa9] sm:$0xff] %vm261, %v719
        %753 = vst.msk [vmem:[%s737 + $0xb1] sm:$0xff] %vm261, %v720
        %754 = vst.msk [vmem:[%s737 + $0xc1] sm:$0xff] %vm261, %v721
        %755 = vst.msk [vmem:[%s737 + $0xc9] sm:$0xff] %vm261, %v722
        %756 = vst.msk [vmem:[%s737 + $0xd9] sm:$0xff] %vm261, %v723
        %757 = vst.msk [vmem:[%s737 + $0xe1] sm:$0xff] %vm261, %v724
        %758 = vst.msk [vmem:[%s737 + $0xf1] sm:$0xff] %vm261, %v725
        %759 = vst.msk [vmem:[%s737 + $0xf9] sm:$0xff] %vm261, %v726
        %760 = vst.msk [vmem:[%s737 + $0x109] sm:$0xff] %vm261, %v727
        %761 = vst.msk [vmem:[%s737 + $0x111] sm:$0xff] %vm261, %v728
        %762 = vst.msk [vmem:[%s737 + $0x121] sm:$0xff] %vm261, %v729
        %763 = vst.msk [vmem:[%s737 + $0x129] sm:$0xff] %vm261, %v730
        %764 = vst.msk [vmem:[%s737 + $0x139] sm:$0xff] %vm261, %v731
        %765 = vst.msk [vmem:[%s737 + $0x141] sm:$0xff] %vm261, %v732
        %766 = vst.msk [vmem:[%s737 + $0x151] sm:$0xff] %vm261, %v733
        %767 = vst.msk [vmem:[%s737 + $0x159] sm:$0xff] %vm261, %v734
        %768 = vst.msk [vmem:[%s737 + $0x169] sm:$0xff] %vm261, %v735
        %769 = vst.msk [vmem:[%s737 + $0x171] sm:$0xff] %vm261, %v736
        %v770 = vld [vmem:[#allocation2] sm:$0xff]
        %v771 = vld [vmem:[#allocation2 + $0x8] sm:$0xff]
        %v772 = vld [vmem:[#allocation2 + $0x18] sm:$0xff]
        %v773 = vld [vmem:[#allocation2 + $0x20] sm:$0xff]
        %v774 = vld [vmem:[#allocation2 + $0x30] sm:$0xff]
        %v775 = vld [vmem:[#allocation2 + $0x38] sm:$0xff]
        %v776 = vld [vmem:[#allocation2 + $0x48] sm:$0xff]
        %v777 = vld [vmem:[#allocation2 + $0x50] sm:$0xff]
        %v778 = vld [vmem:[#allocation2 + $0x60] sm:$0xff]
        %v779 = vld [vmem:[#allocation2 + $0x68] sm:$0xff]
        %v780 = vld [vmem:[#allocation2 + $0x78] sm:$0xff]
        %v781 = vld [vmem:[#allocation2 + $0x80] sm:$0xff]
        %v782 = vld [vmem:[#allocation2 + $0x90] sm:$0xff]
        %v783 = vld [vmem:[#allocation2 + $0x98] sm:$0xff]
        %v784 = vld [vmem:[#allocation2 + $0xa8] sm:$0xff]
        %v785 = vld [vmem:[#allocation2 + $0xb0] sm:$0xff]
        %v786 = vld [vmem:[#allocation2 + $0xc0] sm:$0xff]
        %v787 = vld [vmem:[#allocation2 + $0xc8] sm:$0xff]
        %v788 = vld [vmem:[#allocation2 + $0xd8] sm:$0xff]
        %v789 = vld [vmem:[#allocation2 + $0xe0] sm:$0xff]
        %v790 = vld [vmem:[#allocation2 + $0xf0] sm:$0xff]
        %v791 = vld [vmem:[#allocation2 + $0xf8] sm:$0xff]
        %v792 = vld [vmem:[#allocation2 + $0x108] sm:$0xff]
        %v793 = vld [vmem:[#allocation2 + $0x110] sm:$0xff]
        %v794 = vld [vmem:[#allocation2 + $0x120] sm:$0xff]
        %v795 = vld [vmem:[#allocation2 + $0x128] sm:$0xff]
        %v796 = vld [vmem:[#allocation2 + $0x138] sm:$0xff]
        %v797 = vld [vmem:[#allocation2 + $0x140] sm:$0xff]
        %v798 = vld [vmem:[#allocation2 + $0x150] sm:$0xff]
        %v799 = vld [vmem:[#allocation2 + $0x158] sm:$0xff]
        %v800 = vld [vmem:[#allocation2 + $0x168] sm:$0xff]
        %v801 = vld [vmem:[#allocation2 + $0x170] sm:$0xff]
        %v802 = vld [vmem:[%s3] sm:$0x1]
        %v803 = vlaneseq
        %v804 = vshrl.u32 %v803, 7
        %v805 = vsub.s32 0, %v804
        %v806 = vrot.slane %v802, %v805
        %v807 = vmul.f32 %v770, %v806
        %v808 = vmul.f32 %v771, %v806
        %v809 = vmul.f32 %v772, %v806
        %v810 = vmul.f32 %v773, %v806
        %v811 = vmul.f32 %v774, %v806
        %v812 = vmul.f32 %v775, %v806
        %v813 = vmul.f32 %v776, %v806
        %v814 = vmul.f32 %v777, %v806
        %v815 = vmul.f32 %v778, %v806
        %v816 = vmul.f32 %v779, %v806
        %v817 = vmul.f32 %v780, %v806
        %v818 = vmul.f32 %v781, %v806
        %v819 = vmul.f32 %v782, %v806
        %v820 = vmul.f32 %v783, %v806
        %v821 = vmul.f32 %v784, %v806
        %v822 = vmul.f32 %v785, %v806
        %v823 = vmul.f32 %v786, %v806
        %v824 = vmul.f32 %v787, %v806
        %v825 = vmul.f32 %v788, %v806
        %v826 = vmul.f32 %v789, %v806
        %v827 = vmul.f32 %v790, %v806
        %v828 = vmul.f32 %v791, %v806
        %v829 = vmul.f32 %v792, %v806
        %v830 = vmul.f32 %v793, %v806
        %v831 = vmul.f32 %v794, %v806
        %v832 = vmul.f32 %v795, %v806
        %v833 = vmul.f32 %v796, %v806
        %v834 = vmul.f32 %v797, %v806
        %v835 = vmul.f32 %v798, %v806
        %v836 = vmul.f32 %v799, %v806
        %v837 = vmul.f32 %v800, %v806
        %v838 = vmul.f32 %v801, %v806
        %v839 = vadd.f32 %v807, 0.0
        %v840 = vadd.f32 %v808, 0.0
        %v841 = vadd.f32 %v809, 0.0
        %v842 = vadd.f32 %v810, 0.0
        %v843 = vadd.f32 %v811, 0.0
        %v844 = vadd.f32 %v812, 0.0
        %v845 = vadd.f32 %v813, 0.0
        %v846 = vadd.f32 %v814, 0.0
        %v847 = vadd.f32 %v815, 0.0
        %v848 = vadd.f32 %v816, 0.0
        %v849 = vadd.f32 %v817, 0.0
        %v850 = vadd.f32 %v818, 0.0
        %v851 = vadd.f32 %v819, 0.0
        %v852 = vadd.f32 %v820, 0.0
        %v853 = vadd.f32 %v821, 0.0
        %v854 = vadd.f32 %v822, 0.0
        %v855 = vadd.f32 %v823, 0.0
        %v856 = vadd.f32 %v824, 0.0
        %v857 = vadd.f32 %v825, 0.0
        %v858 = vadd.f32 %v826, 0.0
        %v859 = vadd.f32 %v827, 0.0
        %v860 = vadd.f32 %v828, 0.0
        %v861 = vadd.f32 %v829, 0.0
        %v862 = vadd.f32 %v830, 0.0
        %v863 = vadd.f32 %v831, 0.0
        %v864 = vadd.f32 %v832, 0.0
        %v865 = vadd.f32 %v833, 0.0
        %v866 = vadd.f32 %v834, 0.0
        %v867 = vadd.f32 %v835, 0.0
        %v868 = vadd.f32 %v836, 0.0
        %v869 = vadd.f32 %v837, 0.0
        %v870 = vadd.f32 %v838, 0.0
        %v871 = vld [vmem:[#allocation2 + $0x1] sm:$0xff]
        %v872 = vld [vmem:[#allocation2 + $0x9] sm:$0xff]
        %v873 = vld [vmem:[#allocation2 + $0x19] sm:$0xff]
        %v874 = vld [vmem:[#allocation2 + $0x21] sm:$0xff]
        %v875 = vld [vmem:[#allocation2 + $0x31] sm:$0xff]
        %v876 = vld [vmem:[#allocation2 + $0x39] sm:$0xff]
        %v877 = vld [vmem:[#allocation2 + $0x49] sm:$0xff]
        %v878 = vld [vmem:[#allocation2 + $0x51] sm:$0xff]
        %v879 = vld [vmem:[#allocation2 + $0x61] sm:$0xff]
        %v880 = vld [vmem:[#allocation2 + $0x69] sm:$0xff]
        %v881 = vld [vmem:[#allocation2 + $0x79] sm:$0xff]
        %v882 = vld [vmem:[#allocation2 + $0x81] sm:$0xff]
        %v883 = vld [vmem:[#allocation2 + $0x91] sm:$0xff]
        %v884 = vld [vmem:[#allocation2 + $0x99] sm:$0xff]
        %v885 = vld [vmem:[#allocation2 + $0xa9] sm:$0xff]
        %v886 = vld [vmem:[#allocation2 + $0xb1] sm:$0xff]
        %v887 = vld [vmem:[#allocation2 + $0xc1] sm:$0xff]
        %v888 = vld [vmem:[#allocation2 + $0xc9] sm:$0xff]
        %v889 = vld [vmem:[#allocation2 + $0xd9] sm:$0xff]
        %v890 = vld [vmem:[#allocation2 + $0xe1] sm:$0xff]
        %v891 = vld [vmem:[#allocation2 + $0xf1] sm:$0xff]
        %v892 = vld [vmem:[#allocation2 + $0xf9] sm:$0xff]
        %v893 = vld [vmem:[#allocation2 + $0x109] sm:$0xff]
        %v894 = vld [vmem:[#allocation2 + $0x111] sm:$0xff]
        %v895 = vld [vmem:[#allocation2 + $0x121] sm:$0xff]
        %v896 = vld [vmem:[#allocation2 + $0x129] sm:$0xff]
        %v897 = vld [vmem:[#allocation2 + $0x139] sm:$0xff]
        %v898 = vld [vmem:[#allocation2 + $0x141] sm:$0xff]
        %v899 = vld [vmem:[#allocation2 + $0x151] sm:$0xff]
        %v900 = vld [vmem:[#allocation2 + $0x159] sm:$0xff]
        %v901 = vld [vmem:[#allocation2 + $0x169] sm:$0xff]
        %v902 = vld [vmem:[#allocation2 + $0x171] sm:$0xff]
        %v903 = vld [vmem:[%s3 + $0x1] sm:$0x1]
        %v904 = vlaneseq
        %v905 = vshrl.u32 %v904, 7
        %v906 = vsub.s32 0, %v905
        %v907 = vrot.slane %v903, %v906
        %v908 = vmul.f32 %v871, %v907
        %v909 = vmul.f32 %v872, %v907
        %v910 = vmul.f32 %v873, %v907
        %v911 = vmul.f32 %v874, %v907
        %v912 = vmul.f32 %v875, %v907
        %v913 = vmul.f32 %v876, %v907
        %v914 = vmul.f32 %v877, %v907
        %v915 = vmul.f32 %v878, %v907
        %v916 = vmul.f32 %v879, %v907
        %v917 = vmul.f32 %v880, %v907
        %v918 = vmul.f32 %v881, %v907
        %v919 = vmul.f32 %v882, %v907
        %v920 = vmul.f32 %v883, %v907
        %v921 = vmul.f32 %v884, %v907
        %v922 = vmul.f32 %v885, %v907
        %v923 = vmul.f32 %v886, %v907
        %v924 = vmul.f32 %v887, %v907
        %v925 = vmul.f32 %v888, %v907
        %v926 = vmul.f32 %v889, %v907
        %v927 = vmul.f32 %v890, %v907
        %v928 = vmul.f32 %v891, %v907
        %v929 = vmul.f32 %v892, %v907
        %v930 = vmul.f32 %v893, %v907
        %v931 = vmul.f32 %v894, %v907
        %v932 = vmul.f32 %v895, %v907
        %v933 = vmul.f32 %v896, %v907
        %v934 = vmul.f32 %v897, %v907
        %v935 = vmul.f32 %v898, %v907
        %v936 = vmul.f32 %v899, %v907
        %v937 = vmul.f32 %v900, %v907
        %v938 = vmul.f32 %v901, %v907
        %v939 = vmul.f32 %v902, %v907
        %v940 = vadd.f32 %v839, %v908
        %v941 = vadd.f32 %v840, %v909
        %v942 = vadd.f32 %v841, %v910
        %v943 = vadd.f32 %v842, %v911
        %v944 = vadd.f32 %v843, %v912
        %v945 = vadd.f32 %v844, %v913
        %v946 = vadd.f32 %v845, %v914
        %v947 = vadd.f32 %v846, %v915
        %v948 = vadd.f32 %v847, %v916
        %v949 = vadd.f32 %v848, %v917
        %v950 = vadd.f32 %v849, %v918
        %v951 = vadd.f32 %v850, %v919
        %v952 = vadd.f32 %v851, %v920
        %v953 = vadd.f32 %v852, %v921
        %v954 = vadd.f32 %v853, %v922
        %v955 = vadd.f32 %v854, %v923
        %v956 = vadd.f32 %v855, %v924
        %v957 = vadd.f32 %v856, %v925
        %v958 = vadd.f32 %v857, %v926
        %v959 = vadd.f32 %v858, %v927
        %v960 = vadd.f32 %v859, %v928
        %v961 = vadd.f32 %v860, %v929
        %v962 = vadd.f32 %v861, %v930
        %v963 = vadd.f32 %v862, %v931
        %v964 = vadd.f32 %v863, %v932
        %v965 = vadd.f32 %v864, %v933
        %v966 = vadd.f32 %v865, %v934
        %v967 = vadd.f32 %v866, %v935
        %v968 = vadd.f32 %v867, %v936
        %v969 = vadd.f32 %v868, %v937
        %v970 = vadd.f32 %v869, %v938
        %v971 = vadd.f32 %v870, %v939
        %v972 = vld [vmem:[#allocation2 + $0x2] sm:$0xff]
        %v973 = vld [vmem:[#allocation2 + $0xa] sm:$0xff]
        %v974 = vld [vmem:[#allocation2 + $0x1a] sm:$0xff]
        %v975 = vld [vmem:[#allocation2 + $0x22] sm:$0xff]
        %v976 = vld [vmem:[#allocation2 + $0x32] sm:$0xff]
        %v977 = vld [vmem:[#allocation2 + $0x3a] sm:$0xff]
        %v978 = vld [vmem:[#allocation2 + $0x4a] sm:$0xff]
        %v979 = vld [vmem:[#allocation2 + $0x52] sm:$0xff]
        %v980 = vld [vmem:[#allocation2 + $0x62] sm:$0xff]
        %v981 = vld [vmem:[#allocation2 + $0x6a] sm:$0xff]
        %v982 = vld [vmem:[#allocation2 + $0x7a] sm:$0xff]
        %v983 = vld [vmem:[#allocation2 + $0x82] sm:$0xff]
        %v984 = vld [vmem:[#allocation2 + $0x92] sm:$0xff]
        %v985 = vld [vmem:[#allocation2 + $0x9a] sm:$0xff]
        %v986 = vld [vmem:[#allocation2 + $0xaa] sm:$0xff]
        %v987 = vld [vmem:[#allocation2 + $0xb2] sm:$0xff]
        %v988 = vld [vmem:[#allocation2 + $0xc2] sm:$0xff]
        %v989 = vld [vmem:[#allocation2 + $0xca] sm:$0xff]
        %v990 = vld [vmem:[#allocation2 + $0xda] sm:$0xff]
        %v991 = vld [vmem:[#allocation2 + $0xe2] sm:$0xff]
        %v992 = vld [vmem:[#allocation2 + $0xf2] sm:$0xff]
        %v993 = vld [vmem:[#allocation2 + $0xfa] sm:$0xff]
        %v994 = vld [vmem:[#allocation2 + $0x10a] sm:$0xff]
        %v995 = vld [vmem:[#allocation2 + $0x112] sm:$0xff]
        %v996 = vld [vmem:[#allocation2 + $0x122] sm:$0xff]
        %v997 = vld [vmem:[#allocation2 + $0x12a] sm:$0xff]
        %v998 = vld [vmem:[#allocation2 + $0x13a] sm:$0xff]
        %v999 = vld [vmem:[#allocation2 + $0x142] sm:$0xff]
        %v1000 = vld [vmem:[#allocation2 + $0x152] sm:$0xff]
        %v1001 = vld [vmem:[#allocation2 + $0x15a] sm:$0xff]
        %v1002 = vld [vmem:[#allocation2 + $0x16a] sm:$0xff]
        %v1003 = vld [vmem:[#allocation2 + $0x172] sm:$0xff]
        %v1004 = vld [vmem:[%s3 + $0x2] sm:$0x1]
        %v1005 = vlaneseq
        %v1006 = vshrl.u32 %v1005, 7
        %v1007 = vsub.s32 0, %v1006
        %v1008 = vrot.slane %v1004, %v1007
        %v1009 = vmul.f32 %v972, %v1008
        %v1010 = vmul.f32 %v973, %v1008
        %v1011 = vmul.f32 %v974, %v1008
        %v1012 = vmul.f32 %v975, %v1008
        %v1013 = vmul.f32 %v976, %v1008
        %v1014 = vmul.f32 %v977, %v1008
        %v1015 = vmul.f32 %v978, %v1008
        %v1016 = vmul.f32 %v979, %v1008
        %v1017 = vmul.f32 %v980, %v1008
        %v1018 = vmul.f32 %v981, %v1008
        %v1019 = vmul.f32 %v982, %v1008
        %v1020 = vmul.f32 %v983, %v1008
        %v1021 = vmul.f32 %v984, %v1008
        %v1022 = vmul.f32 %v985, %v1008
        %v1023 = vmul.f32 %v986, %v1008
        %v1024 = vmul.f32 %v987, %v1008
        %v1025 = vmul.f32 %v988, %v1008
        %v1026 = vmul.f32 %v989, %v1008
        %v1027 = vmul.f32 %v990, %v1008
        %v1028 = vmul.f32 %v991, %v1008
        %v1029 = vmul.f32 %v992, %v1008
        %v1030 = vmul.f32 %v993, %v1008
        %v1031 = vmul.f32 %v994, %v1008
        %v1032 = vmul.f32 %v995, %v1008
        %v1033 = vmul.f32 %v996, %v1008
        %v1034 = vmul.f32 %v997, %v1008
        %v1035 = vmul.f32 %v998, %v1008
        %v1036 = vmul.f32 %v999, %v1008
        %v1037 = vmul.f32 %v1000, %v1008
        %v1038 = vmul.f32 %v1001, %v1008
        %v1039 = vmul.f32 %v1002, %v1008
        %v1040 = vmul.f32 %v1003, %v1008
        %v1041 = vadd.f32 %v940, %v1009
        %v1042 = vadd.f32 %v941, %v1010
        %v1043 = vadd.f32 %v942, %v1011
        %v1044 = vadd.f32 %v943, %v1012
        %v1045 = vadd.f32 %v944, %v1013
        %v1046 = vadd.f32 %v945, %v1014
        %v1047 = vadd.f32 %v946, %v1015
        %v1048 = vadd.f32 %v947, %v1016
        %v1049 = vadd.f32 %v948, %v1017
        %v1050 = vadd.f32 %v949, %v1018
        %v1051 = vadd.f32 %v950, %v1019
        %v1052 = vadd.f32 %v951, %v1020
        %v1053 = vadd.f32 %v952, %v1021
        %v1054 = vadd.f32 %v953, %v1022
        %v1055 = vadd.f32 %v954, %v1023
        %v1056 = vadd.f32 %v955, %v1024
        %v1057 = vadd.f32 %v956, %v1025
        %v1058 = vadd.f32 %v957, %v1026
        %v1059 = vadd.f32 %v958, %v1027
        %v1060 = vadd.f32 %v959, %v1028
        %v1061 = vadd.f32 %v960, %v1029
        %v1062 = vadd.f32 %v961, %v1030
        %v1063 = vadd.f32 %v962, %v1031
        %v1064 = vadd.f32 %v963, %v1032
        %v1065 = vadd.f32 %v964, %v1033
        %v1066 = vadd.f32 %v965, %v1034
        %v1067 = vadd.f32 %v966, %v1035
        %v1068 = vadd.f32 %v967, %v1036
        %v1069 = vadd.f32 %v968, %v1037
        %v1070 = vadd.f32 %v969, %v1038
        %v1071 = vadd.f32 %v970, %v1039
        %v1072 = vadd.f32 %v971, %v1040
        %v1073 = vld [vmem:[%s737] sm:$0xff]
        %v1074 = vld [vmem:[%s737 + $0x8] sm:$0xff]
        %v1075 = vld [vmem:[%s737 + $0x18] sm:$0xff]
        %v1076 = vld [vmem:[%s737 + $0x20] sm:$0xff]
        %v1077 = vld [vmem:[%s737 + $0x30] sm:$0xff]
        %v1078 = vld [vmem:[%s737 + $0x38] sm:$0xff]
        %v1079 = vld [vmem:[%s737 + $0x48] sm:$0xff]
        %v1080 = vld [vmem:[%s737 + $0x50] sm:$0xff]
        %v1081 = vld [vmem:[%s737 + $0x60] sm:$0xff]
        %v1082 = vld [vmem:[%s737 + $0x68] sm:$0xff]
        %v1083 = vld [vmem:[%s737 + $0x78] sm:$0xff]
        %v1084 = vld [vmem:[%s737 + $0x80] sm:$0xff]
        %v1085 = vld [vmem:[%s737 + $0x90] sm:$0xff]
        %v1086 = vld [vmem:[%s737 + $0x98] sm:$0xff]
        %v1087 = vld [vmem:[%s737 + $0xa8] sm:$0xff]
        %v1088 = vld [vmem:[%s737 + $0xb0] sm:$0xff]
        %v1089 = vld [vmem:[%s737 + $0xc0] sm:$0xff]
        %v1090 = vld [vmem:[%s737 + $0xc8] sm:$0xff]
        %v1091 = vld [vmem:[%s737 + $0xd8] sm:$0xff]
        %v1092 = vld [vmem:[%s737 + $0xe0] sm:$0xff]
        %v1093 = vld [vmem:[%s737 + $0xf0] sm:$0xff]
        %v1094 = vld [vmem:[%s737 + $0xf8] sm:$0xff]
        %v1095 = vld [vmem:[%s737 + $0x108] sm:$0xff]
        %v1096 = vld [vmem:[%s737 + $0x110] sm:$0xff]
        %v1097 = vld [vmem:[%s737 + $0x120] sm:$0xff]
        %v1098 = vld [vmem:[%s737 + $0x128] sm:$0xff]
        %v1099 = vld [vmem:[%s737 + $0x138] sm:$0xff]
        %v1100 = vld [vmem:[%s737 + $0x140] sm:$0xff]
        %v1101 = vld [vmem:[%s737 + $0x150] sm:$0xff]
        %v1102 = vld [vmem:[%s737 + $0x158] sm:$0xff]
        %v1103 = vld [vmem:[%s737 + $0x168] sm:$0xff]
        %v1104 = vld [vmem:[%s737 + $0x170] sm:$0xff]
        %s1105 = scalar_lea.vmem %s3, 4
        %v1106 = vld [vmem:[%s1105] sm:$0x1]
        %v1107 = vlaneseq
        %v1108 = vshrl.u32 %v1107, 7
        %v1109 = vsub.s32 0, %v1108
        %v1110 = vrot.slane %v1106, %v1109
        %v1111 = vmul.f32 %v1073, %v1110
        %v1112 = vmul.f32 %v1074, %v1110
        %v1113 = vmul.f32 %v1075, %v1110
        %v1114 = vmul.f32 %v1076, %v1110
        %v1115 = vmul.f32 %v1077, %v1110
        %v1116 = vmul.f32 %v1078, %v1110
        %v1117 = vmul.f32 %v1079, %v1110
        %v1118 = vmul.f32 %v1080, %v1110
        %v1119 = vmul.f32 %v1081, %v1110
        %v1120 = vmul.f32 %v1082, %v1110
        %v1121 = vmul.f32 %v1083, %v1110
        %v1122 = vmul.f32 %v1084, %v1110
        %v1123 = vmul.f32 %v1085, %v1110
        %v1124 = vmul.f32 %v1086, %v1110
        %v1125 = vmul.f32 %v1087, %v1110
        %v1126 = vmul.f32 %v1088, %v1110
        %v1127 = vmul.f32 %v1089, %v1110
        %v1128 = vmul.f32 %v1090, %v1110
        %v1129 = vmul.f32 %v1091, %v1110
        %v1130 = vmul.f32 %v1092, %v1110
        %v1131 = vmul.f32 %v1093, %v1110
        %v1132 = vmul.f32 %v1094, %v1110
        %v1133 = vmul.f32 %v1095, %v1110
        %v1134 = vmul.f32 %v1096, %v1110
        %v1135 = vmul.f32 %v1097, %v1110
        %v1136 = vmul.f32 %v1098, %v1110
        %v1137 = vmul.f32 %v1099, %v1110
        %v1138 = vmul.f32 %v1100, %v1110
        %v1139 = vmul.f32 %v1101, %v1110
        %v1140 = vmul.f32 %v1102, %v1110
        %v1141 = vmul.f32 %v1103, %v1110
        %v1142 = vmul.f32 %v1104, %v1110
        %v1143 = vadd.f32 %v1041, %v1111
        %v1144 = vadd.f32 %v1042, %v1112
        %v1145 = vadd.f32 %v1043, %v1113
        %v1146 = vadd.f32 %v1044, %v1114
        %v1147 = vadd.f32 %v1045, %v1115
        %v1148 = vadd.f32 %v1046, %v1116
        %v1149 = vadd.f32 %v1047, %v1117
        %v1150 = vadd.f32 %v1048, %v1118
        %v1151 = vadd.f32 %v1049, %v1119
        %v1152 = vadd.f32 %v1050, %v1120
        %v1153 = vadd.f32 %v1051, %v1121
        %v1154 = vadd.f32 %v1052, %v1122
        %v1155 = vadd.f32 %v1053, %v1123
        %v1156 = vadd.f32 %v1054, %v1124
        %v1157 = vadd.f32 %v1055, %v1125
        %v1158 = vadd.f32 %v1056, %v1126
        %v1159 = vadd.f32 %v1057, %v1127
        %v1160 = vadd.f32 %v1058, %v1128
        %v1161 = vadd.f32 %v1059, %v1129
        %v1162 = vadd.f32 %v1060, %v1130
        %v1163 = vadd.f32 %v1061, %v1131
        %v1164 = vadd.f32 %v1062, %v1132
        %v1165 = vadd.f32 %v1063, %v1133
        %v1166 = vadd.f32 %v1064, %v1134
        %v1167 = vadd.f32 %v1065, %v1135
        %v1168 = vadd.f32 %v1066, %v1136
        %v1169 = vadd.f32 %v1067, %v1137
        %v1170 = vadd.f32 %v1068, %v1138
        %v1171 = vadd.f32 %v1069, %v1139
        %v1172 = vadd.f32 %v1070, %v1140
        %v1173 = vadd.f32 %v1071, %v1141
        %v1174 = vadd.f32 %v1072, %v1142
        %v1175 = vld [vmem:[%s737 + $0x1] sm:$0xff]
        %v1176 = vld [vmem:[%s737 + $0x9] sm:$0xff]
        %v1177 = vld [vmem:[%s737 + $0x19] sm:$0xff]
        %v1178 = vld [vmem:[%s737 + $0x21] sm:$0xff]
        %v1179 = vld [vmem:[%s737 + $0x31] sm:$0xff]
        %v1180 = vld [vmem:[%s737 + $0x39] sm:$0xff]
        %v1181 = vld [vmem:[%s737 + $0x49] sm:$0xff]
        %v1182 = vld [vmem:[%s737 + $0x51] sm:$0xff]
        %v1183 = vld [vmem:[%s737 + $0x61] sm:$0xff]
        %v1184 = vld [vmem:[%s737 + $0x69] sm:$0xff]
        %v1185 = vld [vmem:[%s737 + $0x79] sm:$0xff]
        %v1186 = vld [vmem:[%s737 + $0x81] sm:$0xff]
        %v1187 = vld [vmem:[%s737 + $0x91] sm:$0xff]
        %v1188 = vld [vmem:[%s737 + $0x99] sm:$0xff]
        %v1189 = vld [vmem:[%s737 + $0xa9] sm:$0xff]
        %v1190 = vld [vmem:[%s737 + $0xb1] sm:$0xff]
        %v1191 = vld [vmem:[%s737 + $0xc1] sm:$0xff]
        %v1192 = vld [vmem:[%s737 + $0xc9] sm:$0xff]
        %v1193 = vld [vmem:[%s737 + $0xd9] sm:$0xff]
        %v1194 = vld [vmem:[%s737 + $0xe1] sm:$0xff]
        %v1195 = vld [vmem:[%s737 + $0xf1] sm:$0xff]
        %v1196 = vld [vmem:[%s737 + $0xf9] sm:$0xff]
        %v1197 = vld [vmem:[%s737 + $0x109] sm:$0xff]
        %v1198 = vld [vmem:[%s737 + $0x111] sm:$0xff]
        %v1199 = vld [vmem:[%s737 + $0x121] sm:$0xff]
        %v1200 = vld [vmem:[%s737 + $0x129] sm:$0xff]
        %v1201 = vld [vmem:[%s737 + $0x139] sm:$0xff]
        %v1202 = vld [vmem:[%s737 + $0x141] sm:$0xff]
        %v1203 = vld [vmem:[%s737 + $0x151] sm:$0xff]
        %v1204 = vld [vmem:[%s737 + $0x159] sm:$0xff]
        %v1205 = vld [vmem:[%s737 + $0x169] sm:$0xff]
        %v1206 = vld [vmem:[%s737 + $0x171] sm:$0xff]
        %v1207 = vld [vmem:[%s1105 + $0x1] sm:$0x1]
        %v1208 = vlaneseq
        %v1209 = vshrl.u32 %v1208, 7
        %v1210 = vsub.s32 0, %v1209
        %v1211 = vrot.slane %v1207, %v1210
        %v1212 = vmul.f32 %v1175, %v1211
        %v1213 = vmul.f32 %v1176, %v1211
        %v1214 = vmul.f32 %v1177, %v1211
        %v1215 = vmul.f32 %v1178, %v1211
        %v1216 = vmul.f32 %v1179, %v1211
        %v1217 = vmul.f32 %v1180, %v1211
        %v1218 = vmul.f32 %v1181, %v1211
        %v1219 = vmul.f32 %v1182, %v1211
        %v1220 = vmul.f32 %v1183, %v1211
        %v1221 = vmul.f32 %v1184, %v1211
        %v1222 = vmul.f32 %v1185, %v1211
        %v1223 = vmul.f32 %v1186, %v1211
        %v1224 = vmul.f32 %v1187, %v1211
        %v1225 = vmul.f32 %v1188, %v1211
        %v1226 = vmul.f32 %v1189, %v1211
        %v1227 = vmul.f32 %v1190, %v1211
        %v1228 = vmul.f32 %v1191, %v1211
        %v1229 = vmul.f32 %v1192, %v1211
        %v1230 = vmul.f32 %v1193, %v1211
        %v1231 = vmul.f32 %v1194, %v1211
        %v1232 = vmul.f32 %v1195, %v1211
        %v1233 = vmul.f32 %v1196, %v1211
        %v1234 = vmul.f32 %v1197, %v1211
        %v1235 = vmul.f32 %v1198, %v1211
        %v1236 = vmul.f32 %v1199, %v1211
        %v1237 = vmul.f32 %v1200, %v1211
        %v1238 = vmul.f32 %v1201, %v1211
        %v1239 = vmul.f32 %v1202, %v1211
        %v1240 = vmul.f32 %v1203, %v1211
        %v1241 = vmul.f32 %v1204, %v1211
        %v1242 = vmul.f32 %v1205, %v1211
        %v1243 = vmul.f32 %v1206, %v1211
        %v1244 = vadd.f32 %v1143, %v1212
        %v1245 = vadd.f32 %v1144, %v1213
        %v1246 = vadd.f32 %v1145, %v1214
        %v1247 = vadd.f32 %v1146, %v1215
        %v1248 = vadd.f32 %v1147, %v1216
        %v1249 = vadd.f32 %v1148, %v1217
        %v1250 = vadd.f32 %v1149, %v1218
        %v1251 = vadd.f32 %v1150, %v1219
        %v1252 = vadd.f32 %v1151, %v1220
        %v1253 = vadd.f32 %v1152, %v1221
        %v1254 = vadd.f32 %v1153, %v1222
        %v1255 = vadd.f32 %v1154, %v1223
        %v1256 = vadd.f32 %v1155, %v1224
        %v1257 = vadd.f32 %v1156, %v1225
        %v1258 = vadd.f32 %v1157, %v1226
        %v1259 = vadd.f32 %v1158, %v1227
        %v1260 = vadd.f32 %v1159, %v1228
        %v1261 = vadd.f32 %v1160, %v1229
        %v1262 = vadd.f32 %v1161, %v1230
        %v1263 = vadd.f32 %v1162, %v1231
        %v1264 = vadd.f32 %v1163, %v1232
        %v1265 = vadd.f32 %v1164, %v1233
        %v1266 = vadd.f32 %v1165, %v1234
        %v1267 = vadd.f32 %v1166, %v1235
        %v1268 = vadd.f32 %v1167, %v1236
        %v1269 = vadd.f32 %v1168, %v1237
        %v1270 = vadd.f32 %v1169, %v1238
        %v1271 = vadd.f32 %v1170, %v1239
        %v1272 = vadd.f32 %v1171, %v1240
        %v1273 = vadd.f32 %v1172, %v1241
        %v1274 = vadd.f32 %v1173, %v1242
        %v1275 = vadd.f32 %v1174, %v1243
        %v1276 = vld [vmem:[%s737 + $0x2] sm:$0xff]
        %v1277 = vld [vmem:[%s737 + $0xa] sm:$0xff]
        %v1278 = vld [vmem:[%s737 + $0x1a] sm:$0xff]
        %v1279 = vld [vmem:[%s737 + $0x22] sm:$0xff]
        %v1280 = vld [vmem:[%s737 + $0x32] sm:$0xff]
        %v1281 = vld [vmem:[%s737 + $0x3a] sm:$0xff]
        %v1282 = vld [vmem:[%s737 + $0x4a] sm:$0xff]
        %v1283 = vld [vmem:[%s737 + $0x52] sm:$0xff]
        %v1284 = vld [vmem:[%s737 + $0x62] sm:$0xff]
        %v1285 = vld [vmem:[%s737 + $0x6a] sm:$0xff]
        %v1286 = vld [vmem:[%s737 + $0x7a] sm:$0xff]
        %v1287 = vld [vmem:[%s737 + $0x82] sm:$0xff]
        %v1288 = vld [vmem:[%s737 + $0x92] sm:$0xff]
        %v1289 = vld [vmem:[%s737 + $0x9a] sm:$0xff]
        %v1290 = vld [vmem:[%s737 + $0xaa] sm:$0xff]
        %v1291 = vld [vmem:[%s737 + $0xb2] sm:$0xff]
        %v1292 = vld [vmem:[%s737 + $0xc2] sm:$0xff]
        %v1293 = vld [vmem:[%s737 + $0xca] sm:$0xff]
        %v1294 = vld [vmem:[%s737 + $0xda] sm:$0xff]
        %v1295 = vld [vmem:[%s737 + $0xe2] sm:$0xff]
        %v1296 = vld [vmem:[%s737 + $0xf2] sm:$0xff]
        %v1297 = vld [vmem:[%s737 + $0xfa] sm:$0xff]
        %v1298 = vld [vmem:[%s737 + $0x10a] sm:$0xff]
        %v1299 = vld [vmem:[%s737 + $0x112] sm:$0xff]
        %v1300 = vld [vmem:[%s737 + $0x122] sm:$0xff]
        %v1301 = vld [vmem:[%s737 + $0x12a] sm:$0xff]
        %v1302 = vld [vmem:[%s737 + $0x13a] sm:$0xff]
        %v1303 = vld [vmem:[%s737 + $0x142] sm:$0xff]
        %v1304 = vld [vmem:[%s737 + $0x152] sm:$0xff]
        %v1305 = vld [vmem:[%s737 + $0x15a] sm:$0xff]
        %v1306 = vld [vmem:[%s737 + $0x16a] sm:$0xff]
        %v1307 = vld [vmem:[%s737 + $0x172] sm:$0xff]
        %v1308 = vld [vmem:[%s1105 + $0x2] sm:$0x1]
        %v1309 = vlaneseq
        %v1310 = vshrl.u32 %v1309, 7
        %v1311 = vsub.s32 0, %v1310
        %v1312 = vrot.slane %v1308, %v1311
        %v1313 = vmul.f32 %v1276, %v1312
        %v1314 = vmul.f32 %v1277, %v1312
        %v1315 = vmul.f32 %v1278, %v1312
        %v1316 = vmul.f32 %v1279, %v1312
        %v1317 = vmul.f32 %v1280, %v1312
        %v1318 = vmul.f32 %v1281, %v1312
        %v1319 = vmul.f32 %v1282, %v1312
        %v1320 = vmul.f32 %v1283, %v1312
        %v1321 = vmul.f32 %v1284, %v1312
        %v1322 = vmul.f32 %v1285, %v1312
        %v1323 = vmul.f32 %v1286, %v1312
        %v1324 = vmul.f32 %v1287, %v1312
        %v1325 = vmul.f32 %v1288, %v1312
        %v1326 = vmul.f32 %v1289, %v1312
        %v1327 = vmul.f32 %v1290, %v1312
        %v1328 = vmul.f32 %v1291, %v1312
        %v1329 = vmul.f32 %v1292, %v1312
        %v1330 = vmul.f32 %v1293, %v1312
        %v1331 = vmul.f32 %v1294, %v1312
        %v1332 = vmul.f32 %v1295, %v1312
        %v1333 = vmul.f32 %v1296, %v1312
        %v1334 = vmul.f32 %v1297, %v1312
        %v1335 = vmul.f32 %v1298, %v1312
        %v1336 = vmul.f32 %v1299, %v1312
        %v1337 = vmul.f32 %v1300, %v1312
        %v1338 = vmul.f32 %v1301, %v1312
        %v1339 = vmul.f32 %v1302, %v1312
        %v1340 = vmul.f32 %v1303, %v1312
        %v1341 = vmul.f32 %v1304, %v1312
        %v1342 = vmul.f32 %v1305, %v1312
        %v1343 = vmul.f32 %v1306, %v1312
        %v1344 = vmul.f32 %v1307, %v1312
        %v1345 = vadd.f32 %v1244, %v1313
        %v1346 = vadd.f32 %v1245, %v1314
        %v1347 = vadd.f32 %v1246, %v1315
        %v1348 = vadd.f32 %v1247, %v1316
        %v1349 = vadd.f32 %v1248, %v1317
        %v1350 = vadd.f32 %v1249, %v1318
        %v1351 = vadd.f32 %v1250, %v1319
        %v1352 = vadd.f32 %v1251, %v1320
        %v1353 = vadd.f32 %v1252, %v1321
        %v1354 = vadd.f32 %v1253, %v1322
        %v1355 = vadd.f32 %v1254, %v1323
        %v1356 = vadd.f32 %v1255, %v1324
        %v1357 = vadd.f32 %v1256, %v1325
        %v1358 = vadd.f32 %v1257, %v1326
        %v1359 = vadd.f32 %v1258, %v1327
        %v1360 = vadd.f32 %v1259, %v1328
        %v1361 = vadd.f32 %v1260, %v1329
        %v1362 = vadd.f32 %v1261, %v1330
        %v1363 = vadd.f32 %v1262, %v1331
        %v1364 = vadd.f32 %v1263, %v1332
        %v1365 = vadd.f32 %v1264, %v1333
        %v1366 = vadd.f32 %v1265, %v1334
        %v1367 = vadd.f32 %v1266, %v1335
        %v1368 = vadd.f32 %v1267, %v1336
        %v1369 = vadd.f32 %v1268, %v1337
        %v1370 = vadd.f32 %v1269, %v1338
        %v1371 = vadd.f32 %v1270, %v1339
        %v1372 = vadd.f32 %v1271, %v1340
        %v1373 = vadd.f32 %v1272, %v1341
        %v1374 = vadd.f32 %v1273, %v1342
        %v1375 = vadd.f32 %v1274, %v1343
        %v1376 = vadd.f32 %v1275, %v1344
        %s1377 = scalar_lea.vmem [#allocation2], 48
        %v1378 = vld [vmem:[%s1377] sm:$0xff]
        %v1379 = vld [vmem:[%s1377 + $0x8] sm:$0xff]
        %v1380 = vld [vmem:[%s1377 + $0x18] sm:$0xff]
        %v1381 = vld [vmem:[%s1377 + $0x20] sm:$0xff]
        %v1382 = vld [vmem:[%s1377 + $0x30] sm:$0xff]
        %v1383 = vld [vmem:[%s1377 + $0x38] sm:$0xff]
        %v1384 = vld [vmem:[%s1377 + $0x48] sm:$0xff]
        %v1385 = vld [vmem:[%s1377 + $0x50] sm:$0xff]
        %v1386 = vld [vmem:[%s1377 + $0x60] sm:$0xff]
        %v1387 = vld [vmem:[%s1377 + $0x68] sm:$0xff]
        %v1388 = vld [vmem:[%s1377 + $0x78] sm:$0xff]
        %v1389 = vld [vmem:[%s1377 + $0x80] sm:$0xff]
        %v1390 = vld [vmem:[%s1377 + $0x90] sm:$0xff]
        %v1391 = vld [vmem:[%s1377 + $0x98] sm:$0xff]
        %v1392 = vld [vmem:[%s1377 + $0xa8] sm:$0xff]
        %v1393 = vld [vmem:[%s1377 + $0xb0] sm:$0xff]
        %v1394 = vld [vmem:[%s1377 + $0xc0] sm:$0xff]
        %v1395 = vld [vmem:[%s1377 + $0xc8] sm:$0xff]
        %v1396 = vld [vmem:[%s1377 + $0xd8] sm:$0xff]
        %v1397 = vld [vmem:[%s1377 + $0xe0] sm:$0xff]
        %v1398 = vld [vmem:[%s1377 + $0xf0] sm:$0xff]
        %v1399 = vld [vmem:[%s1377 + $0xf8] sm:$0xff]
        %v1400 = vld [vmem:[%s1377 + $0x108] sm:$0xff]
        %v1401 = vld [vmem:[%s1377 + $0x110] sm:$0xff]
        %v1402 = vld [vmem:[%s1377 + $0x120] sm:$0xff]
        %v1403 = vld [vmem:[%s1377 + $0x128] sm:$0xff]
        %v1404 = vld [vmem:[%s1377 + $0x138] sm:$0xff]
        %v1405 = vld [vmem:[%s1377 + $0x140] sm:$0xff]
        %v1406 = vld [vmem:[%s1377 + $0x150] sm:$0xff]
        %v1407 = vld [vmem:[%s1377 + $0x158] sm:$0xff]
        %v1408 = vld [vmem:[%s1377 + $0x168] sm:$0xff]
        %v1409 = vld [vmem:[%s1377 + $0x170] sm:$0xff]
        %s1410 = scalar_lea.vmem %s3, 8
        %v1411 = vld [vmem:[%s1410] sm:$0x1]
        %v1412 = vlaneseq
        %v1413 = vshrl.u32 %v1412, 7
        %v1414 = vsub.s32 0, %v1413
        %v1415 = vrot.slane %v1411, %v1414
        %v1416 = vmul.f32 %v1378, %v1415
        %v1417 = vmul.f32 %v1379, %v1415
        %v1418 = vmul.f32 %v1380, %v1415
        %v1419 = vmul.f32 %v1381, %v1415
        %v1420 = vmul.f32 %v1382, %v1415
        %v1421 = vmul.f32 %v1383, %v1415
        %v1422 = vmul.f32 %v1384, %v1415
        %v1423 = vmul.f32 %v1385, %v1415
        %v1424 = vmul.f32 %v1386, %v1415
        %v1425 = vmul.f32 %v1387, %v1415
        %v1426 = vmul.f32 %v1388, %v1415
        %v1427 = vmul.f32 %v1389, %v1415
        %v1428 = vmul.f32 %v1390, %v1415
        %v1429 = vmul.f32 %v1391, %v1415
        %v1430 = vmul.f32 %v1392, %v1415
        %v1431 = vmul.f32 %v1393, %v1415
        %v1432 = vmul.f32 %v1394, %v1415
        %v1433 = vmul.f32 %v1395, %v1415
        %v1434 = vmul.f32 %v1396, %v1415
        %v1435 = vmul.f32 %v1397, %v1415
        %v1436 = vmul.f32 %v1398, %v1415
        %v1437 = vmul.f32 %v1399, %v1415
        %v1438 = vmul.f32 %v1400, %v1415
        %v1439 = vmul.f32 %v1401, %v1415
        %v1440 = vmul.f32 %v1402, %v1415
        %v1441 = vmul.f32 %v1403, %v1415
        %v1442 = vmul.f32 %v1404, %v1415
        %v1443 = vmul.f32 %v1405, %v1415
        %v1444 = vmul.f32 %v1406, %v1415
        %v1445 = vmul.f32 %v1407, %v1415
        %v1446 = vmul.f32 %v1408, %v1415
        %v1447 = vmul.f32 %v1409, %v1415
        %v1448 = vadd.f32 %v1345, %v1416
        %v1449 = vadd.f32 %v1346, %v1417
        %v1450 = vadd.f32 %v1347, %v1418
        %v1451 = vadd.f32 %v1348, %v1419
        %v1452 = vadd.f32 %v1349, %v1420
        %v1453 = vadd.f32 %v1350, %v1421
        %v1454 = vadd.f32 %v1351, %v1422
        %v1455 = vadd.f32 %v1352, %v1423
        %v1456 = vadd.f32 %v1353, %v1424
        %v1457 = vadd.f32 %v1354, %v1425
        %v1458 = vadd.f32 %v1355, %v1426
        %v1459 = vadd.f32 %v1356, %v1427
        %v1460 = vadd.f32 %v1357, %v1428
        %v1461 = vadd.f32 %v1358, %v1429
        %v1462 = vadd.f32 %v1359, %v1430
        %v1463 = vadd.f32 %v1360, %v1431
        %v1464 = vadd.f32 %v1361, %v1432
        %v1465 = vadd.f32 %v1362, %v1433
        %v1466 = vadd.f32 %v1363, %v1434
        %v1467 = vadd.f32 %v1364, %v1435
        %v1468 = vadd.f32 %v1365, %v1436
        %v1469 = vadd.f32 %v1366, %v1437
        %v1470 = vadd.f32 %v1367, %v1438
        %v1471 = vadd.f32 %v1368, %v1439
        %v1472 = vadd.f32 %v1369, %v1440
        %v1473 = vadd.f32 %v1370, %v1441
        %v1474 = vadd.f32 %v1371, %v1442
        %v1475 = vadd.f32 %v1372, %v1443
        %v1476 = vadd.f32 %v1373, %v1444
        %v1477 = vadd.f32 %v1374, %v1445
        %v1478 = vadd.f32 %v1375, %v1446
        %v1479 = vadd.f32 %v1376, %v1447
        %v1480 = vld [vmem:[%s1377 + $0x1] sm:$0xff]
        %v1481 = vld [vmem:[%s1377 + $0x9] sm:$0xff]
        %v1482 = vld [vmem:[%s1377 + $0x19] sm:$0xff]
        %v1483 = vld [vmem:[%s1377 + $0x21] sm:$0xff]
        %v1484 = vld [vmem:[%s1377 + $0x31] sm:$0xff]
        %v1485 = vld [vmem:[%s1377 + $0x39] sm:$0xff]
        %v1486 = vld [vmem:[%s1377 + $0x49] sm:$0xff]
        %v1487 = vld [vmem:[%s1377 + $0x51] sm:$0xff]
        %v1488 = vld [vmem:[%s1377 + $0x61] sm:$0xff]
        %v1489 = vld [vmem:[%s1377 + $0x69] sm:$0xff]
        %v1490 = vld [vmem:[%s1377 + $0x79] sm:$0xff]
        %v1491 = vld [vmem:[%s1377 + $0x81] sm:$0xff]
        %v1492 = vld [vmem:[%s1377 + $0x91] sm:$0xff]
        %v1493 = vld [vmem:[%s1377 + $0x99] sm:$0xff]
        %v1494 = vld [vmem:[%s1377 + $0xa9] sm:$0xff]
        %v1495 = vld [vmem:[%s1377 + $0xb1] sm:$0xff]
        %v1496 = vld [vmem:[%s1377 + $0xc1] sm:$0xff]
        %v1497 = vld [vmem:[%s1377 + $0xc9] sm:$0xff]
        %v1498 = vld [vmem:[%s1377 + $0xd9] sm:$0xff]
        %v1499 = vld [vmem:[%s1377 + $0xe1] sm:$0xff]
        %v1500 = vld [vmem:[%s1377 + $0xf1] sm:$0xff]
        %v1501 = vld [vmem:[%s1377 + $0xf9] sm:$0xff]
        %v1502 = vld [vmem:[%s1377 + $0x109] sm:$0xff]
        %v1503 = vld [vmem:[%s1377 + $0x111] sm:$0xff]
        %v1504 = vld [vmem:[%s1377 + $0x121] sm:$0xff]
        %v1505 = vld [vmem:[%s1377 + $0x129] sm:$0xff]
        %v1506 = vld [vmem:[%s1377 + $0x139] sm:$0xff]
        %v1507 = vld [vmem:[%s1377 + $0x141] sm:$0xff]
        %v1508 = vld [vmem:[%s1377 + $0x151] sm:$0xff]
        %v1509 = vld [vmem:[%s1377 + $0x159] sm:$0xff]
        %v1510 = vld [vmem:[%s1377 + $0x169] sm:$0xff]
        %v1511 = vld [vmem:[%s1377 + $0x171] sm:$0xff]
        %v1512 = vld [vmem:[%s1410 + $0x1] sm:$0x1]
        %v1513 = vlaneseq
        %v1514 = vshrl.u32 %v1513, 7
        %v1515 = vsub.s32 0, %v1514
        %v1516 = vrot.slane %v1512, %v1515
        %v1517 = vmul.f32 %v1480, %v1516
        %v1518 = vmul.f32 %v1481, %v1516
        %v1519 = vmul.f32 %v1482, %v1516
        %v1520 = vmul.f32 %v1483, %v1516
        %v1521 = vmul.f32 %v1484, %v1516
        %v1522 = vmul.f32 %v1485, %v1516
        %v1523 = vmul.f32 %v1486, %v1516
        %v1524 = vmul.f32 %v1487, %v1516
        %v1525 = vmul.f32 %v1488, %v1516
        %v1526 = vmul.f32 %v1489, %v1516
        %v1527 = vmul.f32 %v1490, %v1516
        %v1528 = vmul.f32 %v1491, %v1516
        %v1529 = vmul.f32 %v1492, %v1516
        %v1530 = vmul.f32 %v1493, %v1516
        %v1531 = vmul.f32 %v1494, %v1516
        %v1532 = vmul.f32 %v1495, %v1516
        %v1533 = vmul.f32 %v1496, %v1516
        %v1534 = vmul.f32 %v1497, %v1516
        %v1535 = vmul.f32 %v1498, %v1516
        %v1536 = vmul.f32 %v1499, %v1516
        %v1537 = vmul.f32 %v1500, %v1516
        %v1538 = vmul.f32 %v1501, %v1516
        %v1539 = vmul.f32 %v1502, %v1516
        %v1540 = vmul.f32 %v1503, %v1516
        %v1541 = vmul.f32 %v1504, %v1516
        %v1542 = vmul.f32 %v1505, %v1516
        %v1543 = vmul.f32 %v1506, %v1516
        %v1544 = vmul.f32 %v1507, %v1516
        %v1545 = vmul.f32 %v1508, %v1516
        %v1546 = vmul.f32 %v1509, %v1516
        %v1547 = vmul.f32 %v1510, %v1516
        %v1548 = vmul.f32 %v1511, %v1516
        %v1549 = vadd.f32 %v1448, %v1517
        %v1550 = vadd.f32 %v1449, %v1518
        %v1551 = vadd.f32 %v1450, %v1519
        %v1552 = vadd.f32 %v1451, %v1520
        %v1553 = vadd.f32 %v1452, %v1521
        %v1554 = vadd.f32 %v1453, %v1522
        %v1555 = vadd.f32 %v1454, %v1523
        %v1556 = vadd.f32 %v1455, %v1524
        %v1557 = vadd.f32 %v1456, %v1525
        %v1558 = vadd.f32 %v1457, %v1526
        %v1559 = vadd.f32 %v1458, %v1527
        %v1560 = vadd.f32 %v1459, %v1528
        %v1561 = vadd.f32 %v1460, %v1529
        %v1562 = vadd.f32 %v1461, %v1530
        %v1563 = vadd.f32 %v1462, %v1531
        %v1564 = vadd.f32 %v1463, %v1532
        %v1565 = vadd.f32 %v1464, %v1533
        %v1566 = vadd.f32 %v1465, %v1534
        %v1567 = vadd.f32 %v1466, %v1535
        %v1568 = vadd.f32 %v1467, %v1536
        %v1569 = vadd.f32 %v1468, %v1537
        %v1570 = vadd.f32 %v1469, %v1538
        %v1571 = vadd.f32 %v1470, %v1539
        %v1572 = vadd.f32 %v1471, %v1540
        %v1573 = vadd.f32 %v1472, %v1541
        %v1574 = vadd.f32 %v1473, %v1542
        %v1575 = vadd.f32 %v1474, %v1543
        %v1576 = vadd.f32 %v1475, %v1544
        %v1577 = vadd.f32 %v1476, %v1545
        %v1578 = vadd.f32 %v1477, %v1546
        %v1579 = vadd.f32 %v1478, %v1547
        %v1580 = vadd.f32 %v1479, %v1548
        %v1581 = vld [vmem:[%s1377 + $0x2] sm:$0xff]
        %v1582 = vld [vmem:[%s1377 + $0xa] sm:$0xff]
        %v1583 = vld [vmem:[%s1377 + $0x1a] sm:$0xff]
        %v1584 = vld [vmem:[%s1377 + $0x22] sm:$0xff]
        %v1585 = vld [vmem:[%s1377 + $0x32] sm:$0xff]
        %v1586 = vld [vmem:[%s1377 + $0x3a] sm:$0xff]
        %v1587 = vld [vmem:[%s1377 + $0x4a] sm:$0xff]
        %v1588 = vld [vmem:[%s1377 + $0x52] sm:$0xff]
        %v1589 = vld [vmem:[%s1377 + $0x62] sm:$0xff]
        %v1590 = vld [vmem:[%s1377 + $0x6a] sm:$0xff]
        %v1591 = vld [vmem:[%s1377 + $0x7a] sm:$0xff]
        %v1592 = vld [vmem:[%s1377 + $0x82] sm:$0xff]
        %v1593 = vld [vmem:[%s1377 + $0x92] sm:$0xff]
        %v1594 = vld [vmem:[%s1377 + $0x9a] sm:$0xff]
        %v1595 = vld [vmem:[%s1377 + $0xaa] sm:$0xff]
        %v1596 = vld [vmem:[%s1377 + $0xb2] sm:$0xff]
        %v1597 = vld [vmem:[%s1377 + $0xc2] sm:$0xff]
        %v1598 = vld [vmem:[%s1377 + $0xca] sm:$0xff]
        %v1599 = vld [vmem:[%s1377 + $0xda] sm:$0xff]
        %v1600 = vld [vmem:[%s1377 + $0xe2] sm:$0xff]
        %v1601 = vld [vmem:[%s1377 + $0xf2] sm:$0xff]
        %v1602 = vld [vmem:[%s1377 + $0xfa] sm:$0xff]
        %v1603 = vld [vmem:[%s1377 + $0x10a] sm:$0xff]
        %v1604 = vld [vmem:[%s1377 + $0x112] sm:$0xff]
        %v1605 = vld [vmem:[%s1377 + $0x122] sm:$0xff]
        %v1606 = vld [vmem:[%s1377 + $0x12a] sm:$0xff]
        %v1607 = vld [vmem:[%s1377 + $0x13a] sm:$0xff]
        %v1608 = vld [vmem:[%s1377 + $0x142] sm:$0xff]
        %v1609 = vld [vmem:[%s1377 + $0x152] sm:$0xff]
        %v1610 = vld [vmem:[%s1377 + $0x15a] sm:$0xff]
        %v1611 = vld [vmem:[%s1377 + $0x16a] sm:$0xff]
        %v1612 = vld [vmem:[%s1377 + $0x172] sm:$0xff]
        %v1613 = vld [vmem:[%s1410 + $0x2] sm:$0x1]
        %v1614 = vlaneseq
        %v1615 = vshrl.u32 %v1614, 7
        %v1616 = vsub.s32 0, %v1615
        %v1617 = vrot.slane %v1613, %v1616
        %v1618 = vmul.f32 %v1581, %v1617
        %v1619 = vmul.f32 %v1582, %v1617
        %v1620 = vmul.f32 %v1583, %v1617
        %v1621 = vmul.f32 %v1584, %v1617
        %v1622 = vmul.f32 %v1585, %v1617
        %v1623 = vmul.f32 %v1586, %v1617
        %v1624 = vmul.f32 %v1587, %v1617
        %v1625 = vmul.f32 %v1588, %v1617
        %v1626 = vmul.f32 %v1589, %v1617
        %v1627 = vmul.f32 %v1590, %v1617
        %v1628 = vmul.f32 %v1591, %v1617
        %v1629 = vmul.f32 %v1592, %v1617
        %v1630 = vmul.f32 %v1593, %v1617
        %v1631 = vmul.f32 %v1594, %v1617
        %v1632 = vmul.f32 %v1595, %v1617
        %v1633 = vmul.f32 %v1596, %v1617
        %v1634 = vmul.f32 %v1597, %v1617
        %v1635 = vmul.f32 %v1598, %v1617
        %v1636 = vmul.f32 %v1599, %v1617
        %v1637 = vmul.f32 %v1600, %v1617
        %v1638 = vmul.f32 %v1601, %v1617
        %v1639 = vmul.f32 %v1602, %v1617
        %v1640 = vmul.f32 %v1603, %v1617
        %v1641 = vmul.f32 %v1604, %v1617
        %v1642 = vmul.f32 %v1605, %v1617
        %v1643 = vmul.f32 %v1606, %v1617
        %v1644 = vmul.f32 %v1607, %v1617
        %v1645 = vmul.f32 %v1608, %v1617
        %v1646 = vmul.f32 %v1609, %v1617
        %v1647 = vmul.f32 %v1610, %v1617
        %v1648 = vmul.f32 %v1611, %v1617
        %v1649 = vmul.f32 %v1612, %v1617
        %v1650 = vadd.f32 %v1549, %v1618
        %v1651 = vadd.f32 %v1550, %v1619
        %v1652 = vadd.f32 %v1551, %v1620
        %v1653 = vadd.f32 %v1552, %v1621
        %v1654 = vadd.f32 %v1553, %v1622
        %v1655 = vadd.f32 %v1554, %v1623
        %v1656 = vadd.f32 %v1555, %v1624
        %v1657 = vadd.f32 %v1556, %v1625
        %v1658 = vadd.f32 %v1557, %v1626
        %v1659 = vadd.f32 %v1558, %v1627
        %v1660 = vadd.f32 %v1559, %v1628
        %v1661 = vadd.f32 %v1560, %v1629
        %v1662 = vadd.f32 %v1561, %v1630
        %v1663 = vadd.f32 %v1562, %v1631
        %v1664 = vadd.f32 %v1563, %v1632
        %v1665 = vadd.f32 %v1564, %v1633
        %v1666 = vadd.f32 %v1565, %v1634
        %v1667 = vadd.f32 %v1566, %v1635
        %v1668 = vadd.f32 %v1567, %v1636
        %v1669 = vadd.f32 %v1568, %v1637
        %v1670 = vadd.f32 %v1569, %v1638
        %v1671 = vadd.f32 %v1570, %v1639
        %v1672 = vadd.f32 %v1571, %v1640
        %v1673 = vadd.f32 %v1572, %v1641
        %v1674 = vadd.f32 %v1573, %v1642
        %v1675 = vadd.f32 %v1574, %v1643
        %v1676 = vadd.f32 %v1575, %v1644
        %v1677 = vadd.f32 %v1576, %v1645
        %v1678 = vadd.f32 %v1577, %v1646
        %v1679 = vadd.f32 %v1578, %v1647
        %v1680 = vadd.f32 %v1579, %v1648
        %v1681 = vadd.f32 %v1580, %v1649
        %v1682 = vld [vmem:[%s4] sm:$0x1]
        %v1684 = vlaneseq
        %v1685 = vshrl.u32 %v1684, 7
        %v1686 = vsub.s32 0, %v1685
        %v1687 = vrot.slane %v1682, %v1686
        %v1689 = vadd.f32 %v1650, %v1687
        %v1690 = vadd.f32 %v1651, %v1687
        %v1691 = vadd.f32 %v1652, %v1687
        %v1692 = vadd.f32 %v1653, %v1687
        %v1693 = vadd.f32 %v1654, %v1687
        %v1694 = vadd.f32 %v1655, %v1687
        %v1695 = vadd.f32 %v1656, %v1687
        %v1696 = vadd.f32 %v1657, %v1687
        %v1697 = vadd.f32 %v1658, %v1687
        %v1698 = vadd.f32 %v1659, %v1687
        %v1699 = vadd.f32 %v1660, %v1687
        %v1700 = vadd.f32 %v1661, %v1687
        %v1701 = vadd.f32 %v1662, %v1687
        %v1702 = vadd.f32 %v1663, %v1687
        %v1703 = vadd.f32 %v1664, %v1687
        %v1704 = vadd.f32 %v1665, %v1687
        %v1705 = vadd.f32 %v1666, %v1687
        %v1706 = vadd.f32 %v1667, %v1687
        %v1707 = vadd.f32 %v1668, %v1687
        %v1708 = vadd.f32 %v1669, %v1687
        %v1709 = vadd.f32 %v1670, %v1687
        %v1710 = vadd.f32 %v1671, %v1687
        %v1711 = vadd.f32 %v1672, %v1687
        %v1712 = vadd.f32 %v1673, %v1687
        %v1713 = vadd.f32 %v1674, %v1687
        %v1714 = vadd.f32 %v1675, %v1687
        %v1715 = vadd.f32 %v1676, %v1687
        %v1716 = vadd.f32 %v1677, %v1687
        %v1717 = vadd.f32 %v1678, %v1687
        %v1718 = vadd.f32 %v1679, %v1687
        %v1719 = vadd.f32 %v1680, %v1687
        %v1720 = vadd.f32 %v1681, %v1687
        %v1721 = vsel %vm261, %v1689, 0.0
        %v1722 = vsel %vm261, %v1690, 0.0
        %v1723 = vadd.f32 %v1721, %v1722
        %v1724 = vsel %vm261, %v1691, 0.0
        %v1725 = vadd.f32 %v1723, %v1724
        %v1726 = vsel %vm261, %v1692, 0.0
        %v1727 = vadd.f32 %v1725, %v1726
        %v1728 = vsel %vm261, %v1693, 0.0
        %v1729 = vadd.f32 %v1727, %v1728
        %v1730 = vsel %vm261, %v1694, 0.0
        %v1731 = vadd.f32 %v1729, %v1730
        %v1732 = vsel %vm261, %v1695, 0.0
        %v1733 = vadd.f32 %v1731, %v1732
        %v1734 = vsel %vm261, %v1696, 0.0
        %v1735 = vadd.f32 %v1733, %v1734
        %v1736 = vsel %vm261, %v1697, 0.0
        %v1737 = vadd.f32 %v1735, %v1736
        %v1738 = vsel %vm261, %v1698, 0.0
        %v1739 = vadd.f32 %v1737, %v1738
        %v1740 = vsel %vm261, %v1699, 0.0
        %v1741 = vadd.f32 %v1739, %v1740
        %v1742 = vsel %vm261, %v1700, 0.0
        %v1743 = vadd.f32 %v1741, %v1742
        %v1744 = vsel %vm261, %v1701, 0.0
        %v1745 = vadd.f32 %v1743, %v1744
        %v1746 = vsel %vm261, %v1702, 0.0
        %v1747 = vadd.f32 %v1745, %v1746
        %v1748 = vsel %vm261, %v1703, 0.0
        %v1749 = vadd.f32 %v1747, %v1748
        %v1750 = vsel %vm261, %v1704, 0.0
        %v1751 = vadd.f32 %v1749, %v1750
        %v1752 = vsel %vm261, %v1705, 0.0
        %v1753 = vadd.f32 %v1751, %v1752
        %v1754 = vsel %vm261, %v1706, 0.0
        %v1755 = vadd.f32 %v1753, %v1754
        %v1756 = vsel %vm261, %v1707, 0.0
        %v1757 = vadd.f32 %v1755, %v1756
        %v1758 = vsel %vm261, %v1708, 0.0
        %v1759 = vadd.f32 %v1757, %v1758
        %v1760 = vsel %vm261, %v1709, 0.0
        %v1761 = vadd.f32 %v1759, %v1760
        %v1762 = vsel %vm261, %v1710, 0.0
        %v1763 = vadd.f32 %v1761, %v1762
        %v1764 = vsel %vm261, %v1711, 0.0
        %v1765 = vadd.f32 %v1763, %v1764
        %v1766 = vsel %vm261, %v1712, 0.0
        %v1767 = vadd.f32 %v1765, %v1766
        %v1768 = vsel %vm261, %v1713, 0.0
        %v1769 = vadd.f32 %v1767, %v1768
        %v1770 = vsel %vm261, %v1714, 0.0
        %v1771 = vadd.f32 %v1769, %v1770
        %v1772 = vsel %vm261, %v1715, 0.0
        %v1773 = vadd.f32 %v1771, %v1772
        %v1774 = vsel %vm261, %v1716, 0.0
        %v1775 = vadd.f32 %v1773, %v1774
        %v1776 = vsel %vm261, %v1717, 0.0
        %v1777 = vadd.f32 %v1775, %v1776
        %v1778 = vsel %vm261, %v1718, 0.0
        %v1779 = vadd.f32 %v1777, %v1778
        %v1780 = vsel %vm261, %v1719, 0.0
        %v1781 = vadd.f32 %v1779, %v1780
        %v1782 = vsel %vm261, %v1720, 0.0
        %v1783 = vadd.f32 %v1781, %v1782
        %v1784 = vrot.slane %v1783, 4
        %v1785 = vadd.f32 %v1783, %v1784
        %v1786 = vrot.slane %v1785, 2
        %v1787 = vadd.f32 %v1785, %v1786
        %v1788 = vrot.slane %v1787, 1
        %v1789 = vadd.f32 %v1787, %v1788
        %1790 = vst.msk [vmem:[%s254] sm:$0x1] %vm270, %v1789
        %v1791 = vpack.c.bf16 %v1690, %v1689
        %v1792 = vpack.c.bf16 %v1692, %v1691
        %v1793 = vpack.c.bf16 %v1694, %v1693
        %v1794 = vpack.c.bf16 %v1696, %v1695
        %v1795 = vpack.c.bf16 %v1698, %v1697
        %v1796 = vpack.c.bf16 %v1700, %v1699
        %v1797 = vpack.c.bf16 %v1702, %v1701
        %v1798 = vpack.c.bf16 %v1704, %v1703
        %v1799 = vpack.c.bf16 %v1706, %v1705
        %v1800 = vpack.c.bf16 %v1708, %v1707
        %v1801 = vpack.c.bf16 %v1710, %v1709
        %v1802 = vpack.c.bf16 %v1712, %v1711
        %v1803 = vpack.c.bf16 %v1714, %v1713
        %v1804 = vpack.c.bf16 %v1716, %v1715
        %v1805 = vpack.c.bf16 %v1718, %v1717
        %v1806 = vpack.c.bf16 %v1720, %v1719
        %v1823 = vunpack.c.l.b16 %v1791
        %v1824 = vunpack.c.h.b16 %v1791
        %v1825 = vunpack.c.l.b16 %v1792
        %v1826 = vunpack.c.h.b16 %v1792
        %v1827 = vunpack.c.l.b16 %v1793
        %v1828 = vunpack.c.h.b16 %v1793
        %v1829 = vunpack.c.l.b16 %v1794
        %v1830 = vunpack.c.h.b16 %v1794
        %v1831 = vunpack.c.l.b16 %v1795
        %v1832 = vunpack.c.h.b16 %v1795
        %v1833 = vunpack.c.l.b16 %v1796
        %v1834 = vunpack.c.h.b16 %v1796
        %v1835 = vunpack.c.l.b16 %v1797
        %v1836 = vunpack.c.h.b16 %v1797
        %v1837 = vunpack.c.l.b16 %v1798
        %v1838 = vunpack.c.h.b16 %v1798
        %v1839 = vunpack.c.l.b16 %v1799
        %v1840 = vunpack.c.h.b16 %v1799
        %v1841 = vunpack.c.l.b16 %v1800
        %v1842 = vunpack.c.h.b16 %v1800
        %v1843 = vunpack.c.l.b16 %v1801
        %v1844 = vunpack.c.h.b16 %v1801
        %v1845 = vunpack.c.l.b16 %v1802
        %v1846 = vunpack.c.h.b16 %v1802
        %v1847 = vunpack.c.l.b16 %v1803
        %v1848 = vunpack.c.h.b16 %v1803
        %v1849 = vunpack.c.l.b16 %v1804
        %v1850 = vunpack.c.h.b16 %v1804
        %v1851 = vunpack.c.l.b16 %v1805
        %v1852 = vunpack.c.h.b16 %v1805
        %v1853 = vunpack.c.l.b16 %v1806
        %v1854 = vunpack.c.h.b16 %v1806
        %v1855 = vpack.c.b16 %v1823, %v1823
        %v1856 = vpack.c.b16 %v1824, %v1824
        %v1857 = vpack.c.b16 %v1825, %v1825
        %v1858 = vpack.c.b16 %v1826, %v1826
        %v1859 = vpack.c.b16 %v1827, %v1827
        %v1860 = vpack.c.b16 %v1828, %v1828
        %v1861 = vpack.c.b16 %v1829, %v1829
        %v1862 = vpack.c.b16 %v1830, %v1830
        %v1863 = vpack.c.b16 %v1831, %v1831
        %v1864 = vpack.c.b16 %v1832, %v1832
        %v1865 = vpack.c.b16 %v1833, %v1833
        %v1866 = vpack.c.b16 %v1834, %v1834
        %v1867 = vpack.c.b16 %v1835, %v1835
        %v1868 = vpack.c.b16 %v1836, %v1836
        %v1869 = vpack.c.b16 %v1837, %v1837
        %v1870 = vpack.c.b16 %v1838, %v1838
        %v1871 = vpack.c.b16 %v1839, %v1839
        %v1872 = vpack.c.b16 %v1840, %v1840
        %v1873 = vpack.c.b16 %v1841, %v1841
        %v1874 = vpack.c.b16 %v1842, %v1842
        %v1875 = vpack.c.b16 %v1843, %v1843
        %v1876 = vpack.c.b16 %v1844, %v1844
        %v1877 = vpack.c.b16 %v1845, %v1845
        %v1878 = vpack.c.b16 %v1846, %v1846
        %v1879 = vpack.c.b16 %v1847, %v1847
        %v1880 = vpack.c.b16 %v1848, %v1848
        %v1881 = vpack.c.b16 %v1849, %v1849
        %v1882 = vpack.c.b16 %v1850, %v1850
        %v1883 = vpack.c.b16 %v1851, %v1851
        %v1884 = vpack.c.b16 %v1852, %v1852
        %v1885 = vpack.c.b16 %v1853, %v1853
        %v1886 = vpack.c.b16 %v1854, %v1854
        %vm1919 = vcmask 125952
        %1920 = vst.msk [vmem:[%s248] sm:$0xf] %vm1919, %v1855
        %1921 = vst.msk [vmem:[%s248 + $0x4] sm:$0xf] %vm1919, %v1856
        %1922 = vst.msk [vmem:[%s248 + $0x8] sm:$0xf] %vm1919, %v1857
        %1923 = vst.msk [vmem:[%s248 + $0xc] sm:$0xf] %vm1919, %v1858
        %1924 = vst.msk [vmem:[%s248 + $0x10] sm:$0xf] %vm1919, %v1859
        %1925 = vst.msk [vmem:[%s248 + $0x14] sm:$0xf] %vm1919, %v1860
        %1926 = vst.msk [vmem:[%s248 + $0x18] sm:$0xf] %vm1919, %v1861
        %1927 = vst.msk [vmem:[%s248 + $0x1c] sm:$0xf] %vm1919, %v1862
        %1928 = vst.msk [vmem:[%s248 + $0x20] sm:$0xf] %vm1919, %v1863
        %1929 = vst.msk [vmem:[%s248 + $0x24] sm:$0xf] %vm1919, %v1864
        %1930 = vst.msk [vmem:[%s248 + $0x28] sm:$0xf] %vm1919, %v1865
        %1931 = vst.msk [vmem:[%s248 + $0x2c] sm:$0xf] %vm1919, %v1866
        %1932 = vst.msk [vmem:[%s248 + $0x30] sm:$0xf] %vm1919, %v1867
        %1933 = vst.msk [vmem:[%s248 + $0x34] sm:$0xf] %vm1919, %v1868
        %1934 = vst.msk [vmem:[%s248 + $0x38] sm:$0xf] %vm1919, %v1869
        %1935 = vst.msk [vmem:[%s248 + $0x3c] sm:$0xf] %vm1919, %v1870
        %1936 = vst.msk [vmem:[%s248 + $0x40] sm:$0xf] %vm1919, %v1871
        %1937 = vst.msk [vmem:[%s248 + $0x44] sm:$0xf] %vm1919, %v1872
        %1938 = vst.msk [vmem:[%s248 + $0x48] sm:$0xf] %vm1919, %v1873
        %1939 = vst.msk [vmem:[%s248 + $0x4c] sm:$0xf] %vm1919, %v1874
        %1940 = vst.msk [vmem:[%s248 + $0x50] sm:$0xf] %vm1919, %v1875
        %1941 = vst.msk [vmem:[%s248 + $0x54] sm:$0xf] %vm1919, %v1876
        %1942 = vst.msk [vmem:[%s248 + $0x58] sm:$0xf] %vm1919, %v1877
        %1943 = vst.msk [vmem:[%s248 + $0x5c] sm:$0xf] %vm1919, %v1878
        %1944 = vst.msk [vmem:[%s248 + $0x60] sm:$0xf] %vm1919, %v1879
        %1945 = vst.msk [vmem:[%s248 + $0x64] sm:$0xf] %vm1919, %v1880
        %1946 = vst.msk [vmem:[%s248 + $0x68] sm:$0xf] %vm1919, %v1881
        %1947 = vst.msk [vmem:[%s248 + $0x6c] sm:$0xf] %vm1919, %v1882
        %1948 = vst.msk [vmem:[%s248 + $0x70] sm:$0xf] %vm1919, %v1883
        %1949 = vst.msk [vmem:[%s248 + $0x74] sm:$0xf] %vm1919, %v1884
        %1950 = vst.msk [vmem:[%s248 + $0x78] sm:$0xf] %vm1919, %v1885
        %1951 = vst.msk [vmem:[%s248 + $0x7c] sm:$0xf] %vm1919, %v1886
        %s1952 = sand.u32 %s142, 1
        %s1953 = scalar_lea.sflag [#allocation4], %s1952
        %s1954 = sand.u32 %s142, 1
        %s1955 = smul.addr %s1954, 128
        %s1956 = scalar_lea.vmem [#allocation3], %s1955
        %s1957 = sand.u32 %s168, 1
        %s1958 = scalar_lea.sflag [#allocation6], %s1957
        %s1959 = sand.u32 %s168, 1
        %s1960 = scalar_lea.vmem [#allocation5], %s1959
        // Predicated region
        $region41: #{tpu_custom_call.1} parent=39 // pred_check
          %p1961 = pneg %p152
        $region42: #{tpu_custom_call.1} parent=39 // pred_check_branch
          %1963 = sbr.rel (%p1961) target = $region44
        $region43: #{tpu_custom_call.1} parent=39 // pred_region
          %s1965 = ssub.s32 2048, 2048
          %1966 = vsyncadd %s1953, %s1965
          %s1967 = smul.addr %s24, 32
          %s1968 = smul.addr %s1967, 64
          %s1969 = scalar_lea.hbm %s5, %s1968
          %s1970 = sshll.u32 %s1956, 4
          %s1971 = int_to_ptr.vmem [resolvable:$true] %s1970
          %1976 = dma.vmem_to_hbm [thread:$0]  %s1971, 2048, %s1969, %s1953, 64, 64, 4
        $region44: #{tpu_custom_call.1} parent=39 // pred_fallthru
          _
        // Predicated region
        $region45: #{tpu_custom_call.1} parent=39 // pred_check
          %p1977 = pneg %p178
        $region46: #{tpu_custom_call.1} parent=39 // pred_check_branch
          %1979 = sbr.rel (%p1977) target = $region48
        $region47: #{tpu_custom_call.1} parent=39 // pred_region
          %s1981 = ssub.s32 16, 16
          %1982 = vsyncadd %s1958, %s1981
          %s1983 = smul.addr %s24, 16
          %s1984 = scalar_lea.hbm %s6, %s1983
          %s1986 = sshll.u32 %s1960, 4
          %s1987 = int_to_ptr.vmem [resolvable:$true] %s1986
          %1989 = dma.vmem_to_hbm [thread:$0]  %s1987, 16, %s1984, %s1958
        $region48: #{tpu_custom_call.1} parent=39 // pred_fallthru
          _
      $region40: #{tpu_custom_call.1} parent=5 // pred_fallthru
        _
      %p1990 = scmp.le.s32.totalorder 2, %s19
      // Predicated region
      $region49: #{tpu_custom_call.1} parent=5 // pred_check
        %p1991 = pneg %p1990
      $region50: #{tpu_custom_call.1} parent=5 // pred_check_branch
        %1993 = sbr.rel (%p1991) target = $region52
      $region51: #{tpu_custom_call.1} parent=5 // pred_region
        %s1994 = ssub.s32 %s19, 2
        // Predicated region
        $region53: #{tpu_custom_call.1} parent=51 // pred_check
          %p1995 = pneg %p158
        $region54: #{tpu_custom_call.1} parent=51 // pred_check_branch
          %1997 = sbr.rel (%p1995) target = $region56
        $region55: #{tpu_custom_call.1} parent=51 // pred_region
          %s1998 = sand.u32 %s143, 1
          %s1999 = scalar_lea.sflag [#allocation4], %s1998
          %s2000 = sand.u32 %s143, 1
          %s2001 = smul.addr %s2000, 128
          %s2002 = scalar_lea.vmem [#allocation3], %s2001
          %2003 = dma.done %s1999, 2048
        $region56: #{tpu_custom_call.1} parent=51 // pred_fallthru
          _
        // Predicated region
        $region57: #{tpu_custom_call.1} parent=51 // pred_check
          %p2004 = pneg %p184
        $region58: #{tpu_custom_call.1} parent=51 // pred_check_branch
          %2006 = sbr.rel (%p2004) target = $region60
        $region59: #{tpu_custom_call.1} parent=51 // pred_region
          %s2007 = sand.u32 %s169, 1
          %s2008 = scalar_lea.sflag [#allocation6], %s2007
          %s2009 = sand.u32 %s169, 1
          %s2010 = scalar_lea.vmem [#allocation5], %s2009
          %2011 = dma.done %s2008, 16
        $region60: #{tpu_custom_call.1} parent=51 // pred_fallthru
          _
      $region52: #{tpu_custom_call.1} parent=5 // pred_fallthru
        _
    $region6: #{tpu_custom_call.1} parent=1 // loop_footer
      %s23 = sadd.s32 1, %s19
    $region7: #{tpu_custom_call.1} parent=1 // loop_footer_branch
      %18 = sbr.rel target = $region3
    $region8: #{tpu_custom_call.1} parent=1 // loop_exit
      _
    %2012 = vsyncpa [#allocation4], 1
    %s2013 = scalar_lea.sflag [#allocation4], 1
    %2014 = vsyncpa %s2013, 1
    %2015 = vsyncpa [#allocation6], 1
    %s2016 = scalar_lea.sflag [#allocation6], 1
    %2017 = vsyncpa %s2016, 1

</llo_original>
